<compile_context>
chip_gen: v7x
topology: tpu7x:2x2x1
jax: 0.10.0
libtpu: 0.0.40
codegen_flags: <defaults>
</compile_context>

<pallas_src>
import jax
import jax.numpy as jnp
from jax.experimental import pallas as pl
from jax.experimental.pallas import tpu as pltpu


def _round_up(a: int, b: int) -> int:
    return (a + b - 1) // b * b


def _sublane_multiple(dtype) -> int:
    # 8 rows/sublane-tile for 32-bit, 16 for bf16, 32 for 8-bit dtypes.
    return 32 // jnp.dtype(dtype).itemsize


def _vmem_capacity_bytes() -> int:
    try:
        info = pltpu.get_tpu_info()
        for attr in ("vmem_capacity_bytes", "vmem_bytes", "vmem_size_bytes"):
            v = getattr(info, attr, None)
            if v:
                return int(v)
    except Exception:
        pass
    return 128 << 20  # conservative default (v5e/v6e)


def _mlp_kernel(x_ref, wg_ref, wu_ref, wd_ref, o_ref, acc_ref):
    # x_ref:   (tm, H)        token tile
    # wg_ref:  (H, ti)        gate_proj weight tile ((in, out) layout)
    # wu_ref:  (H, ti)        up_proj weight tile
    # wd_ref:  (ti, H)        down_proj weight tile
    # o_ref:   (tm, H)        output tile (resident across the inner I axis)
    # acc_ref: (tm, H) f32    VMEM accumulator scratch
    j = pl.program_id(1)

    x = x_ref[...]
    g = jnp.dot(x, wg_ref[...], preferred_element_type=jnp.float32)
    u = jnp.dot(x, wu_ref[...], preferred_element_type=jnp.float32)
    # SiLU (swish) in f32, gate the up projection, partial down_proj.
    h = (g * jax.nn.sigmoid(g)) * u
    partial = jnp.dot(h.astype(wd_ref.dtype), wd_ref[...],
                      preferred_element_type=jnp.float32)

    @pl.when(j == 0)
    def _first():
        acc_ref[...] = partial          # direct write: no zero-init pass

    @pl.when(j > 0)
    def _accum():
        acc_ref[...] += partial

    @pl.when(j == pl.num_programs(1) - 1)
    def _store():
        o_ref[...] = acc_ref[...].astype(o_ref.dtype)


def _vmem_limit_bytes(tm, ti, H, itemsize, vmem_cap, single_io_buf) -> int:
    io_bufs = 1 if single_io_buf else 2
    x_b = io_bufs * tm * H * itemsize
    o_b = io_bufs * tm * H * itemsize
    w_b = 2 * (2 * H * ti + ti * H) * itemsize   # wg, wu, wd double-buffered
    acc_b = tm * H * 4
    want = int((x_b + o_b + w_b + acc_b) * 1.2) + (2 << 20)
    cap = int(vmem_cap * 0.9)                    # headroom below physical VMEM
    return max(16 << 20, min(want, cap))


def deepseek_v3_mlp(x, wg_t, wu_t, wd_t, *, tm=None, ti=None):
    """DeepseekV3 MLP forward: (silu(x @ wg_t) * (x @ wu_t)) @ wd_t.

    x:    (..., H)
    wg_t: (H, I) gate_proj weight, transposed once at load time from (I, H)
    wu_t: (H, I) up_proj weight, transposed
    wd_t: (I, H) down_proj weight, transposed
    tm:   token tile (primary VMEM knob; default 512)
    ti:   intermediate tile (default 512 on 128-MiB VMEM parts, 256 on v7x)
    """
    orig_shape = x.shape
    H = orig_shape[-1]
    I = wg_t.shape[1]
    assert wg_t.shape == (H, I) and wu_t.shape == (H, I) and wd_t.shape == (I, H)

    dtype = x.dtype
    itemsize = jnp.dtype(dtype).itemsize
    sub = _sublane_multiple(dtype)

    vmem_cap = _vmem_capacity_bytes()
    big_vmem = vmem_cap > (96 << 20)   # v5e/v6e have 128 MiB; v7x has 64 MiB
    num_tc = 1 if big_vmem else 2      # v7x has 2 TensorCores per chip

    if tm is None:
        tm = 512
    if ti is None:
        ti = 512 if big_vmem else 256

    x2 = x.reshape(-1, H)
    T = x2.shape[0]

    # Token tile: primary knob; clamp for tiny inputs; keep sublane-aligned.
    tm = _round_up(max(int(tm), sub), sub)
    tm_eff = min(tm, _round_up(T, sub))
    if num_tc >= 2 and T > sub:
        # Ensure >= 2 token tiles so the "parallel" axis shards across both TCs.
        tm_eff = min(tm_eff, _round_up((T + 1) // 2, sub))
    tm_eff = max(tm_eff, sub)
    T_pad = _round_up(T, tm_eff)
    if T_pad != T:
        x2 = jnp.pad(x2, ((0, T_pad - T), (0, 0)))

    # Intermediate tile.
    ti_eff = min(int(ti), I)
    if ti_eff < I:
        assert ti_eff % 128 == 0, "intermediate tile must be a multiple of 128"
        assert I % ti_eff == 0, (
            "intermediate_size must be divisible by the intermediate tile")
    nI = I // ti_eff

    wg = wg_t.astype(dtype)
    wu = wu_t.astype(dtype)
    wd = wd_t.astype(dtype)

    grid = (T_pad // tm_eff, nI)
    out_shape = jax.ShapeDtypeStruct((T_pad, H), dtype)

    def run(single_io_buf: bool):
        io_kwargs = {"pipeline_mode": pl.Buffered(1)} if single_io_buf else {}
        in_specs = [
            pl.BlockSpec((tm_eff, H), lambda i, j: (i, 0), **io_kwargs),  # x
            pl.BlockSpec((H, ti_eff), lambda i, j: (0, j)),               # gate W
            pl.BlockSpec((H, ti_eff), lambda i, j: (0, j)),               # up W
            pl.BlockSpec((ti_eff, H), lambda i, j: (j, 0)),               # down W
        ]
        out_spec = pl.BlockSpec((tm_eff, H), lambda i, j: (i, 0), **io_kwargs)
        vmem_limit = _vmem_limit_bytes(tm_eff, ti_eff, H, itemsize,
                                       vmem_cap, single_io_buf)
        return pl.pallas_call(
            _mlp_kernel,
            out_shape=out_shape,
            grid_spec=pltpu.PrefetchScalarGridSpec(
                num_scalar_prefetch=0,
                grid=grid,
                in_specs=in_specs,
                out_specs=out_spec,
                scratch_shapes=[pltpu.VMEM((tm_eff, H), jnp.float32)],
            ),
            compiler_params=pltpu.CompilerParams(
                dimension_semantics=("parallel", "arbitrary"),
                vmem_limit_bytes=vmem_limit,
            ),
        )(x2, wg, wu, wd)

    try:
        out = run(hasattr(pl, "Buffered"))
    except Exception:
        # Fall back to default double-buffering if pipeline_mode=Buffered(1)
        # is rejected by this jax/mosaic version.
        out = run(False)

    return out[:T].reshape(orig_shape)


def _reference(x, wg_t, wu_t, wd_t):
    # f32 math on same-precision inputs; mirrors the kernel's cast of the
    # activated hidden state back to the compute dtype before down_proj.
    xf = x.astype(jnp.float32)
    g = xf @ wg_t.astype(jnp.float32)
    u = xf @ wu_t.astype(jnp.float32)
    h = (jax.nn.silu(g) * u).astype(x.dtype).astype(jnp.float32)
    return (h @ wd_t.astype(jnp.float32)).astype(x.dtype)


if __name__ == "__main__":
    batch, seq = 2, 25            # deliberately NOT a multiple of the token tile
    hidden_size = 128             # config.hidden_size (toy)
    intermediate_size = 512       # config.intermediate_size (toy)
    # config.hidden_act == "silu" for DeepseekV3

    key = jax.random.PRNGKey(0)
    kx, kg, ku, kd = jax.random.split(key, 4)

    dt = jnp.bfloat16
    scale_h = 1.0 / (hidden_size ** 0.5)
    scale_i = 1.0 / (intermediate_size ** 0.5)

    x = jax.random.normal(kx, (batch, seq, hidden_size), jnp.float32).astype(dt)
    # nn.Linear weights are (out, in); kernel takes the one-time (in, out) transpose.
    wg_t = (jax.random.normal(kg, (hidden_size, intermediate_size), jnp.float32) * scale_h).astype(dt)
    wu_t = (jax.random.normal(ku, (hidden_size, intermediate_size), jnp.float32) * scale_h).astype(dt)
    wd_t = (jax.random.normal(kd, (intermediate_size, hidden_size), jnp.float32) * scale_i).astype(dt)

    ref = _reference(x, wg_t, wu_t, wd_t).astype(jnp.float32)

    # 1) Default (auto) tiles — token tile clamps to the padded token count.
    out_default = deepseek_v3_mlp(x, wg_t, wu_t, wd_t)
    jax.block_until_ready(out_default)

    # 2) Small explicit tiles — exercises token padding (T=50 -> 64), multiple
    #    token tiles, and the I-axis accumulator across 4 steps.
    out_tiled = deepseek_v3_mlp(x, wg_t, wu_t, wd_t, tm=32, ti=128)
    jax.block_until_ready(out_tiled)

    for out in (out_default, out_tiled):
        assert out.shape == (batch, seq, hidden_size)
        assert jnp.allclose(out.astype(jnp.float32), ref, atol=3e-2, rtol=3e-2), \
            "mismatch vs reference"

    print("KERNEL_OK")
</pallas_src>

<mosaic_0001>
module attributes {stable_mosaic.version = 11 : i64} {
  func.func @_mlp_kernel(%arg0: i32, %arg1: i32, %arg2: memref<64x128xbf16, #tpu.memory_space<vmem>>, %arg3: memref<128x512xbf16, #tpu.memory_space<vmem>>, %arg4: memref<128x512xbf16, #tpu.memory_space<vmem>>, %arg5: memref<512x128xbf16, #tpu.memory_space<vmem>>, %arg6: memref<64x128xbf16, #tpu.memory_space<vmem>>, %arg7: memref<64x128xf32, #tpu.memory_space<vmem>>) attributes {dimension_semantics = [#tpu.dimension_semantics<parallel>, #tpu.dimension_semantics<arbitrary>], iteration_bounds = array<i64: 1, 1>, scalar_prefetch = 0 : i64, scratch_operands = 1 : i64, tpu.core_type = #tpu.core_type<tc>, window_params = [{pipeline_mode = #tpu.pipeline_mode<synchronous>, transform_indices = @transform_0, window_bounds = array<i64: 64, 128>}, {transform_indices = @transform_1, window_bounds = array<i64: 128, 512>}, {transform_indices = @transform_2, window_bounds = array<i64: 128, 512>}, {transform_indices = @transform_3, window_bounds = array<i64: 512, 128>}, {pipeline_mode = #tpu.pipeline_mode<synchronous>, transform_indices = @transform_4, window_bounds = array<i64: 64, 128>}]} {
    %c0 = arith.constant 0 : index
    %c0_0 = arith.constant 0 : index
    %0 = vector.load %arg2[%c0, %c0_0] : memref<64x128xbf16, #tpu.memory_space<vmem>>, vector<64x128xbf16>
    %c0_1 = arith.constant 0 : index
    %c0_2 = arith.constant 0 : index
    %1 = vector.load %arg3[%c0_1, %c0_2] : memref<128x512xbf16, #tpu.memory_space<vmem>>, vector<128x512xbf16>
    %cst = arith.constant dense<0.000000e+00> : vector<64x512xf32>
    %2 = tpu.matmul %0, %1, %cst {dimension_numbers = #tpu.dot_dimension_numbers<[1], [0], [0], [1], [0, 0, 1, 1], [], []>} : vector<64x128xbf16>, vector<128x512xbf16>, vector<64x512xf32> -> vector<64x512xf32>
    %c0_3 = arith.constant 0 : index
    %c0_4 = arith.constant 0 : index
    %3 = vector.load %arg4[%c0_3, %c0_4] : memref<128x512xbf16, #tpu.memory_space<vmem>>, vector<128x512xbf16>
    %cst_5 = arith.constant dense<0.000000e+00> : vector<64x512xf32>
    %4 = tpu.matmul %0, %3, %cst_5 {dimension_numbers = #tpu.dot_dimension_numbers<[1], [0], [0], [1], [0, 0, 1, 1], [], []>} : vector<64x128xbf16>, vector<128x512xbf16>, vector<64x512xf32> -> vector<64x512xf32>
    %5 = arith.negf %2 : vector<64x512xf32>
    %6 = math.exp %5 : vector<64x512xf32>
    %cst_6 = arith.constant 1.000000e+00 : f32
    %7 = vector.broadcast %cst_6 : f32 to vector<64x512xf32>
    %8 = arith.addf %7, %6 : vector<64x512xf32>
    %9 = arith.divf %7, %8 : vector<64x512xf32>
    %10 = arith.mulf %2, %9 : vector<64x512xf32>
    %11 = arith.mulf %10, %4 : vector<64x512xf32>
    %12 = arith.truncf %11 : vector<64x512xf32> to vector<64x512xbf16>
    %c0_7 = arith.constant 0 : index
    %c0_8 = arith.constant 0 : index
    %13 = vector.load %arg5[%c0_7, %c0_8] : memref<512x128xbf16, #tpu.memory_space<vmem>>, vector<512x128xbf16>
    %cst_9 = arith.constant dense<0.000000e+00> : vector<64x128xf32>
    %14 = tpu.matmul %12, %13, %cst_9 {dimension_numbers = #tpu.dot_dimension_numbers<[1], [0], [0], [1], [0, 0, 1, 1], [], []>} : vector<64x512xbf16>, vector<512x128xbf16>, vector<64x128xf32> -> vector<64x128xf32>
    %c0_i32 = arith.constant 0 : i32
    %15 = arith.cmpi eq, %arg1, %c0_i32 : i32
    %16 = arith.extui %15 : i1 to i32
    %c0_i32_10 = arith.constant 0 : i32
    %17 = arith.cmpi ne, %16, %c0_i32_10 : i32
    scf.if %17 {
      %c0_15 = arith.constant 0 : index
      %c0_16 = arith.constant 0 : index
      %24 = vector.load %arg7[%c0_15, %c0_16] : memref<64x128xf32, #tpu.memory_space<vmem>>, vector<64x128xf32>
      tpu.vector_store %arg7[%c0_15, %c0_16], %14 {strides = array<i32>} : memref<64x128xf32, #tpu.memory_space<vmem>>, vector<64x128xf32>,
    } else {
    }
    %c0_i32_11 = arith.constant 0 : i32
    %18 = arith.cmpi sgt, %arg1, %c0_i32_11 : i32
    %19 = arith.extui %18 : i1 to i32
    %c0_i32_12 = arith.constant 0 : i32
    %20 = arith.cmpi ne, %19, %c0_i32_12 : i32
    scf.if %20 {
      %c0_15 = arith.constant 0 : index
      %c0_16 = arith.constant 0 : index
      %24 = vector.load %arg7[%c0_15, %c0_16] : memref<64x128xf32, #tpu.memory_space<vmem>>, vector<64x128xf32>
      %25 = arith.addf %24, %14 : vector<64x128xf32>
      %c0_17 = arith.constant 0 : index
      %c0_18 = arith.constant 0 : index
      %26 = vector.load %arg7[%c0_17, %c0_18] : memref<64x128xf32, #tpu.memory_space<vmem>>, vector<64x128xf32>
      tpu.vector_store %arg7[%c0_17, %c0_18], %25 {strides = array<i32>} : memref<64x128xf32, #tpu.memory_space<vmem>>, vector<64x128xf32>,
    } else {
    }
    %c0_i32_13 = arith.constant 0 : i32
    %21 = arith.cmpi eq, %arg1, %c0_i32_13 : i32
    %22 = arith.extui %21 : i1 to i32
    %c0_i32_14 = arith.constant 0 : i32
    %23 = arith.cmpi ne, %22, %c0_i32_14 : i32
    scf.if %23 {
      %c0_15 = arith.constant 0 : index
      %c0_16 = arith.constant 0 : index
      %24 = vector.load %arg7[%c0_15, %c0_16] : memref<64x128xf32, #tpu.memory_space<vmem>>, vector<64x128xf32>
      %25 = arith.truncf %24 : vector<64x128xf32> to vector<64x128xbf16>
      %c0_17 = arith.constant 0 : index
      %c0_18 = arith.constant 0 : index
      %26 = vector.load %arg6[%c0_17, %c0_18] : memref<64x128xbf16, #tpu.memory_space<vmem>>, vector<64x128xbf16>
      tpu.vector_store %arg6[%c0_17, %c0_18], %25 {strides = array<i32>} : memref<64x128xbf16, #tpu.memory_space<vmem>>, vector<64x128xbf16>,
    } else {
    }
    return
  }
  func.func @transform_0(%arg0: i32, %arg1: i32) -> (i32, i32) {
    %c0_i32 = arith.constant 0 : i32
    %c0_i32_0 = arith.constant 0 : i32
    return %arg0, %c0_i32 : i32, i32
  }
  func.func @transform_1(%arg0: i32, %arg1: i32) -> (i32, i32) {
    %c0_i32 = arith.constant 0 : i32
    %c0_i32_0 = arith.constant 0 : i32
    return %c0_i32, %arg1 : i32, i32
  }
  func.func @transform_2(%arg0: i32, %arg1: i32) -> (i32, i32) {
    %c0_i32 = arith.constant 0 : i32
    %c0_i32_0 = arith.constant 0 : i32
    return %c0_i32, %arg1 : i32, i32
  }
  func.func @transform_3(%arg0: i32, %arg1: i32) -> (i32, i32) {
    %c0_i32 = arith.constant 0 : i32
    %c0_i32_0 = arith.constant 0 : i32
    return %arg1, %c0_i32 : i32, i32
  }
  func.func @transform_4(%arg0: i32, %arg1: i32) -> (i32, i32) {
    %c0_i32 = arith.constant 0 : i32
    %c0_i32_0 = arith.constant 0 : i32
    return %arg0, %c0_i32 : i32, i32
  }
}

module attributes {stable_mosaic.version = 11 : i64} {
  func.func @_mlp_kernel(%arg0: i32, %arg1: i32, %arg2: memref<64x128xbf16, #tpu.memory_space<vmem>>, %arg3: memref<128x512xbf16, #tpu.memory_space<vmem>>, %arg4: memref<128x512xbf16, #tpu.memory_space<vmem>>, %arg5: memref<512x128xbf16, #tpu.memory_space<vmem>>, %arg6: memref<64x128xbf16, #tpu.memory_space<vmem>>, %arg7: memref<64x128xf32, #tpu.memory_space<vmem>>) attributes {dimension_semantics = [#tpu.dimension_semantics<parallel>, #tpu.dimension_semantics<arbitrary>], iteration_bounds = array<i64: 1, 1>, scalar_prefetch = 0 : i64, scratch_operands = 1 : i64, tpu.core_type = #tpu.core_type<tc>, window_params = [{transform_indices = @transform_0, window_bounds = array<i64: 64, 128>}, {transform_indices = @transform_1, window_bounds = array<i64: 128, 512>}, {transform_indices = @transform_2, window_bounds = array<i64: 128, 512>}, {transform_indices = @transform_3, window_bounds = array<i64: 512, 128>}, {transform_indices = @transform_4, window_bounds = array<i64: 64, 128>}]} {
    %c0 = arith.constant 0 : index
    %c0_0 = arith.constant 0 : index
    %0 = vector.load %arg2[%c0, %c0_0] : memref<64x128xbf16, #tpu.memory_space<vmem>>, vector<64x128xbf16>
    %c0_1 = arith.constant 0 : index
    %c0_2 = arith.constant 0 : index
    %1 = vector.load %arg3[%c0_1, %c0_2] : memref<128x512xbf16, #tpu.memory_space<vmem>>, vector<128x512xbf16>
    %cst = arith.constant dense<0.000000e+00> : vector<64x512xf32>
    %2 = tpu.matmul %0, %1, %cst {dimension_numbers = #tpu.dot_dimension_numbers<[1], [0], [0], [1], [0, 0, 1, 1], [], []>} : vector<64x128xbf16>, vector<128x512xbf16>, vector<64x512xf32> -> vector<64x512xf32>
    %c0_3 = arith.constant 0 : index
    %c0_4 = arith.constant 0 : index
    %3 = vector.load %arg4[%c0_3, %c0_4] : memref<128x512xbf16, #tpu.memory_space<vmem>>, vector<128x512xbf16>
    %cst_5 = arith.constant dense<0.000000e+00> : vector<64x512xf32>
    %4 = tpu.matmul %0, %3, %cst_5 {dimension_numbers = #tpu.dot_dimension_numbers<[1], [0], [0], [1], [0, 0, 1, 1], [], []>} : vector<64x128xbf16>, vector<128x512xbf16>, vector<64x512xf32> -> vector<64x512xf32>
    %5 = arith.negf %2 : vector<64x512xf32>
    %6 = math.exp %5 : vector<64x512xf32>
    %cst_6 = arith.constant 1.000000e+00 : f32
    %7 = vector.broadcast %cst_6 : f32 to vector<64x512xf32>
    %8 = arith.addf %7, %6 : vector<64x512xf32>
    %9 = arith.divf %7, %8 : vector<64x512xf32>
    %10 = arith.mulf %2, %9 : vector<64x512xf32>
    %11 = arith.mulf %10, %4 : vector<64x512xf32>
    %12 = arith.truncf %11 : vector<64x512xf32> to vector<64x512xbf16>
    %c0_7 = arith.constant 0 : index
    %c0_8 = arith.constant 0 : index
    %13 = vector.load %arg5[%c0_7, %c0_8] : memref<512x128xbf16, #tpu.memory_space<vmem>>, vector<512x128xbf16>
    %cst_9 = arith.constant dense<0.000000e+00> : vector<64x128xf32>
    %14 = tpu.matmul %12, %13, %cst_9 {dimension_numbers = #tpu.dot_dimension_numbers<[1], [0], [0], [1], [0, 0, 1, 1], [], []>} : vector<64x512xbf16>, vector<512x128xbf16>, vector<64x128xf32> -> vector<64x128xf32>
    %c0_i32 = arith.constant 0 : i32
    %15 = arith.cmpi eq, %arg1, %c0_i32 : i32
    %16 = arith.extui %15 : i1 to i32
    %c0_i32_10 = arith.constant 0 : i32
    %17 = arith.cmpi ne, %16, %c0_i32_10 : i32
    scf.if %17 {
      %c0_15 = arith.constant 0 : index
      %c0_16 = arith.constant 0 : index
      %24 = vector.load %arg7[%c0_15, %c0_16] : memref<64x128xf32, #tpu.memory_space<vmem>>, vector<64x128xf32>
      tpu.vector_store %arg7[%c0_15, %c0_16], %14 {strides = array<i32>} : memref<64x128xf32, #tpu.memory_space<vmem>>, vector<64x128xf32>,
    } else {
    }
    %c0_i32_11 = arith.constant 0 : i32
    %18 = arith.cmpi sgt, %arg1, %c0_i32_11 : i32
    %19 = arith.extui %18 : i1 to i32
    %c0_i32_12 = arith.constant 0 : i32
    %20 = arith.cmpi ne, %19, %c0_i32_12 : i32
    scf.if %20 {
      %c0_15 = arith.constant 0 : index
      %c0_16 = arith.constant 0 : index
      %24 = vector.load %arg7[%c0_15, %c0_16] : memref<64x128xf32, #tpu.memory_space<vmem>>, vector<64x128xf32>
      %25 = arith.addf %24, %14 : vector<64x128xf32>
      %c0_17 = arith.constant 0 : index
      %c0_18 = arith.constant 0 : index
      %26 = vector.load %arg7[%c0_17, %c0_18] : memref<64x128xf32, #tpu.memory_space<vmem>>, vector<64x128xf32>
      tpu.vector_store %arg7[%c0_17, %c0_18], %25 {strides = array<i32>} : memref<64x128xf32, #tpu.memory_space<vmem>>, vector<64x128xf32>,
    } else {
    }
    %c0_i32_13 = arith.constant 0 : i32
    %21 = arith.cmpi eq, %arg1, %c0_i32_13 : i32
    %22 = arith.extui %21 : i1 to i32
    %c0_i32_14 = arith.constant 0 : i32
    %23 = arith.cmpi ne, %22, %c0_i32_14 : i32
    scf.if %23 {
      %c0_15 = arith.constant 0 : index
      %c0_16 = arith.constant 0 : index
      %24 = vector.load %arg7[%c0_15, %c0_16] : memref<64x128xf32, #tpu.memory_space<vmem>>, vector<64x128xf32>
      %25 = arith.truncf %24 : vector<64x128xf32> to vector<64x128xbf16>
      %c0_17 = arith.constant 0 : index
      %c0_18 = arith.constant 0 : index
      %26 = vector.load %arg6[%c0_17, %c0_18] : memref<64x128xbf16, #tpu.memory_space<vmem>>, vector<64x128xbf16>
      tpu.vector_store %arg6[%c0_17, %c0_18], %25 {strides = array<i32>} : memref<64x128xbf16, #tpu.memory_space<vmem>>, vector<64x128xbf16>,
    } else {
    }
    return
  }
  func.func @transform_0(%arg0: i32, %arg1: i32) -> (i32, i32) {
    %c0_i32 = arith.constant 0 : i32
    %c0_i32_0 = arith.constant 0 : i32
    return %arg0, %c0_i32 : i32, i32
  }
  func.func @transform_1(%arg0: i32, %arg1: i32) -> (i32, i32) {
    %c0_i32 = arith.constant 0 : i32
    %c0_i32_0 = arith.constant 0 : i32
    return %c0_i32, %arg1 : i32, i32
  }
  func.func @transform_2(%arg0: i32, %arg1: i32) -> (i32, i32) {
    %c0_i32 = arith.constant 0 : i32
    %c0_i32_0 = arith.constant 0 : i32
    return %c0_i32, %arg1 : i32, i32
  }
  func.func @transform_3(%arg0: i32, %arg1: i32) -> (i32, i32) {
    %c0_i32 = arith.constant 0 : i32
    %c0_i32_0 = arith.constant 0 : i32
    return %arg1, %c0_i32 : i32, i32
  }
  func.func @transform_4(%arg0: i32, %arg1: i32) -> (i32, i32) {
    %c0_i32 = arith.constant 0 : i32
    %c0_i32_0 = arith.constant 0 : i32
    return %arg0, %c0_i32 : i32, i32
  }
}

</mosaic_0001>

<llo_original>
// kernel: tpu_custom_call.1
$region0: #{tpu_custom_call.1}
  #allocation0 [shape = 'u32[]', space=smem, size = 0x4, offset = 0x4, fixed_abs, tag = 'smem constant byte address 0x4 - core index']
  #allocation1 [shape = 'u32[144,128]{1,0:T(1,128)}', space=vmem, size = 0x12000, scoped, tag = 'internal scratch']
  #allocation2 [shape = 'f32[64,128]{1,0:T(8,128)}', space=vmem, size = 0x8000, scoped, tag = 'scratch operand']
  %s0 = inlined_call_operand.hbm [shape: bf16[64,128], index: 0, kind: input, shape index: {}]
  %s1 = inlined_call_operand.hbm [shape: bf16[128,512], index: 1, kind: input, shape index: {}]
  %s2 = inlined_call_operand.hbm [shape: bf16[128,512], index: 2, kind: input, shape index: {}]
  %s3 = inlined_call_operand.hbm [shape: bf16[512,128], index: 3, kind: input, shape index: {}]
  %s4 = inlined_call_operand.hbm [shape: bf16[64,128], index: 4, kind: output, shape index: {}]
  %s5 = sld [smem:[#allocation0]]
  $region54: #{tpu_custom_call.1} parent=0
    _
  %s7 = ssub.s32 1, %s5
  %s8 = scalar_select 0, %s7, %s5
  $region1: #{tpu_custom_call.1} parent=0
    #allocation3 [shape = 'u8[16384]{0}', space=vmem, size = 0x4000, scoped, tag = 'input window, operand 0, single buffered']
    #allocation4 [shape = 's32[1]{0}', space=sflag, size = 0x4, scoped, tag = 'scoped memory for tpu_custom_call.1']
    #allocation5 [shape = 's32[1]{0}', space=sflag, size = 0x4, scoped, tag = 'scoped memory for tpu_custom_call.1']
    #allocation6 [shape = 'u8[131072]{0}', space=vmem, size = 0x20000, scoped, tag = 'input window, operand 1, single buffered']
    #allocation7 [shape = 's32[1]{0}', space=sflag, size = 0x4, scoped, tag = 'scoped memory for tpu_custom_call.1']
    #allocation8 [shape = 'u8[131072]{0}', space=vmem, size = 0x20000, scoped, tag = 'input window, operand 2, single buffered']
    #allocation9 [shape = 'u8[131072]{0}', space=vmem, size = 0x20000, scoped, tag = 'input window, operand 3, single buffered']
    #allocation10 [shape = 's32[1]{0}', space=sflag, size = 0x4, scoped, tag = 'scoped memory for tpu_custom_call.1']
    #allocation11 [shape = 'u8[16384]{0}', space=vmem, size = 0x4000, scoped, tag = 'output window, operand 0, single buffered']
    %9 = vsyncpa [#allocation4], 0
    %10 = vsyncpa [#allocation7], 0
    %11 = vsyncpa [#allocation10], 0
    %12 = vsyncpa [#allocation5], 0
    // Predicated region
    $region2: #{tpu_custom_call.1} parent=1 // pred_check
      _
    $region3: #{tpu_custom_call.1} parent=1 // pred_check_branch
      %14 = sbr.rel (0) target = $region5
    $region4: #{tpu_custom_call.1} parent=1 // pred_region
      %s16 = ssub.s32 512, 512
      %17 = vsyncadd [#allocation4], %s16
      %s18 = sshll.u32 [#allocation3], 4
      %s19 = int_to_ptr.vmem [resolvable:$true] %s18
      %24 = dma.hbm_to_vmem [thread:$0]  %s0, 512, %s19, [#allocation4], 64, 64, 4
    $region5: #{tpu_custom_call.1} parent=1 // pred_fallthru
      _
    // Predicated region
    $region6: #{tpu_custom_call.1} parent=1 // pred_check
      _
    $region7: #{tpu_custom_call.1} parent=1 // pred_check_branch
      %26 = sbr.rel (0) target = $region9
    $region8: #{tpu_custom_call.1} parent=1 // pred_region
      %s28 = ssub.s32 4096, 4096
      %29 = vsyncadd [#allocation7], %s28
      %s30 = sshll.u32 [#allocation6], 4
      %s31 = int_to_ptr.vmem [resolvable:$true] %s30
      %36 = dma.hbm_to_vmem [thread:$0]  %s1, 4096, %s31, [#allocation7], 256, 256, 16
    $region9: #{tpu_custom_call.1} parent=1 // pred_fallthru
      _
    // Predicated region
    $region10: #{tpu_custom_call.1} parent=1 // pred_check
      _
    $region11: #{tpu_custom_call.1} parent=1 // pred_check_branch
      %38 = sbr.rel (0) target = $region13
    $region12: #{tpu_custom_call.1} parent=1 // pred_region
      %s40 = ssub.s32 4096, 4096
      %41 = vsyncadd [#allocation7], %s40
      %s42 = sshll.u32 [#allocation8], 4
      %s43 = int_to_ptr.vmem [resolvable:$true] %s42
      %48 = dma.hbm_to_vmem [thread:$0]  %s2, 4096, %s43, [#allocation7], 256, 256, 16
    $region13: #{tpu_custom_call.1} parent=1 // pred_fallthru
      _
    // Predicated region
    $region14: #{tpu_custom_call.1} parent=1 // pred_check
      _
    $region15: #{tpu_custom_call.1} parent=1 // pred_check_branch
      %50 = sbr.rel (0) target = $region17
    $region16: #{tpu_custom_call.1} parent=1 // pred_region
      %s52 = ssub.s32 4096, 4096
      %53 = vsyncadd [#allocation10], %s52
      %s54 = sshll.u32 [#allocation9], 4
      %s55 = int_to_ptr.vmem [resolvable:$true] %s54
      %60 = dma.hbm_to_vmem [thread:$0]  %s3, 4096, %s55, [#allocation10], 64, 64, 4
    $region17: #{tpu_custom_call.1} parent=1 // pred_fallthru
      _
    // Predicated region
    $region18: #{tpu_custom_call.1} parent=1 // pred_check
      _
    $region19: #{tpu_custom_call.1} parent=1 // pred_check_branch
      %62 = sbr.rel (0) target = $region21
    $region20: #{tpu_custom_call.1} parent=1 // pred_region
      %63 = dma.done [#allocation4], 512
    $region21: #{tpu_custom_call.1} parent=1 // pred_fallthru
      _
    // Predicated region
    $region22: #{tpu_custom_call.1} parent=1 // pred_check
      _
    $region23: #{tpu_custom_call.1} parent=1 // pred_check_branch
      %65 = sbr.rel (0) target = $region25
    $region24: #{tpu_custom_call.1} parent=1 // pred_region
      %66 = dma.done [#allocation7], 4096
    $region25: #{tpu_custom_call.1} parent=1 // pred_fallthru
      _
    // Predicated region
    $region26: #{tpu_custom_call.1} parent=1 // pred_check
      _
    $region27: #{tpu_custom_call.1} parent=1 // pred_check_branch
      %68 = sbr.rel (0) target = $region29
    $region28: #{tpu_custom_call.1} parent=1 // pred_region
      %69 = dma.done [#allocation7], 4096
    $region29: #{tpu_custom_call.1} parent=1 // pred_fallthru
      _
    // Predicated region
    $region30: #{tpu_custom_call.1} parent=1 // pred_check
      _
    $region31: #{tpu_custom_call.1} parent=1 // pred_check_branch
      %71 = sbr.rel (0) target = $region33
    $region32: #{tpu_custom_call.1} parent=1 // pred_region
      %72 = dma.done [#allocation10], 4096
    $region33: #{tpu_custom_call.1} parent=1 // pred_fallthru
      _
    %v74 = vld [vmem:[#allocation3] sm:$0xf]
    %v75 = vld [vmem:[#allocation3 + $0x4] sm:$0xf]
    %v76 = vld [vmem:[#allocation3 + $0x8] sm:$0xf]
    %v77 = vld [vmem:[#allocation3 + $0xc] sm:$0xf]
    %v78 = vld [vmem:[#allocation3 + $0x10] sm:$0xf]
    %v79 = vld [vmem:[#allocation3 + $0x14] sm:$0xf]
    %v80 = vld [vmem:[#allocation3 + $0x18] sm:$0xf]
    %v81 = vld [vmem:[#allocation3 + $0x1c] sm:$0xf]
    %v82 = vld [vmem:[#allocation6] sm:$0xff]
    %v83 = vld [vmem:[#allocation6 + $0x8] sm:$0xff]
    %v84 = vld [vmem:[#allocation6 + $0x10] sm:$0xff]
    %v85 = vld [vmem:[#allocation6 + $0x18] sm:$0xff]
    %v86 = vld [vmem:[#allocation6 + $0x20] sm:$0xff]
    %v87 = vld [vmem:[#allocation6 + $0x28] sm:$0xff]
    %v88 = vld [vmem:[#allocation6 + $0x30] sm:$0xff]
    %v89 = vld [vmem:[#allocation6 + $0x38] sm:$0xff]
    %v90 = vld [vmem:[#allocation6 + $0x40] sm:$0xff]
    %v91 = vld [vmem:[#allocation6 + $0x48] sm:$0xff]
    %v92 = vld [vmem:[#allocation6 + $0x50] sm:$0xff]
    %v93 = vld [vmem:[#allocation6 + $0x58] sm:$0xff]
    %v94 = vld [vmem:[#allocation6 + $0x60] sm:$0xff]
    %v95 = vld [vmem:[#allocation6 + $0x68] sm:$0xff]
    %v96 = vld [vmem:[#allocation6 + $0x70] sm:$0xff]
    %v97 = vld [vmem:[#allocation6 + $0x78] sm:$0xff]
    %v98 = vld [vmem:[#allocation6 + $0x80] sm:$0xff]
    %v99 = vld [vmem:[#allocation6 + $0x88] sm:$0xff]
    %v100 = vld [vmem:[#allocation6 + $0x90] sm:$0xff]
    %v101 = vld [vmem:[#allocation6 + $0x98] sm:$0xff]
    %v102 = vld [vmem:[#allocation6 + $0xa0] sm:$0xff]
    %v103 = vld [vmem:[#allocation6 + $0xa8] sm:$0xff]
    %v104 = vld [vmem:[#allocation6 + $0xb0] sm:$0xff]
    %v105 = vld [vmem:[#allocation6 + $0xb8] sm:$0xff]
    %v106 = vld [vmem:[#allocation6 + $0xc0] sm:$0xff]
    %v107 = vld [vmem:[#allocation6 + $0xc8] sm:$0xff]
    %v108 = vld [vmem:[#allocation6 + $0xd0] sm:$0xff]
    %v109 = vld [vmem:[#allocation6 + $0xd8] sm:$0xff]
    %v110 = vld [vmem:[#allocation6 + $0xe0] sm:$0xff]
    %v111 = vld [vmem:[#allocation6 + $0xe8] sm:$0xff]
    %v112 = vld [vmem:[#allocation6 + $0xf0] sm:$0xff]
    %v113 = vld [vmem:[#allocation6 + $0xf8] sm:$0xff]
    %v122 = vunpack.c.l.b16 %v74
    %v123 = vunpack.c.l.b16 %v75
    %v124 = vunpack.c.l.b16 %v76
    %v125 = vunpack.c.l.b16 %v77
    %v126 = vunpack.c.l.b16 %v78
    %v127 = vunpack.c.l.b16 %v79
    %v128 = vunpack.c.l.b16 %v80
    %v129 = vunpack.c.l.b16 %v81
    %v130 = vpack.c.b16 %v123, %v122
    %v131 = vpack.c.b16 %v125, %v124
    %v132 = vpack.c.b16 %v127, %v126
    %v133 = vpack.c.b16 %v129, %v128
    %v170 = vunpack.c.l.b16 %v82
    %v171 = vunpack.c.h.b16 %v82
    %v172 = vunpack.c.l.b16 %v83
    %v173 = vunpack.c.h.b16 %v83
    %v174 = vunpack.c.l.b16 %v84
    %v175 = vunpack.c.h.b16 %v84
    %v176 = vunpack.c.l.b16 %v85
    %v177 = vunpack.c.h.b16 %v85
    %v178 = vunpack.c.l.b16 %v86
    %v179 = vunpack.c.h.b16 %v86
    %v180 = vunpack.c.l.b16 %v87
    %v181 = vunpack.c.h.b16 %v87
    %v182 = vunpack.c.l.b16 %v88
    %v183 = vunpack.c.h.b16 %v88
    %v184 = vunpack.c.l.b16 %v89
    %v185 = vunpack.c.h.b16 %v89
    %v186 = vunpack.c.l.b16 %v90
    %v187 = vunpack.c.h.b16 %v90
    %v188 = vunpack.c.l.b16 %v91
    %v189 = vunpack.c.h.b16 %v91
    %v190 = vunpack.c.l.b16 %v92
    %v191 = vunpack.c.h.b16 %v92
    %v192 = vunpack.c.l.b16 %v93
    %v193 = vunpack.c.h.b16 %v93
    %v194 = vunpack.c.l.b16 %v94
    %v195 = vunpack.c.h.b16 %v94
    %v196 = vunpack.c.l.b16 %v95
    %v197 = vunpack.c.h.b16 %v95
    %v198 = vunpack.c.l.b16 %v96
    %v199 = vunpack.c.h.b16 %v96
    %v200 = vunpack.c.l.b16 %v97
    %v201 = vunpack.c.h.b16 %v97
    %v202 = vunpack.c.l.b16 %v98
    %v203 = vunpack.c.h.b16 %v98
    %v204 = vunpack.c.l.b16 %v99
    %v205 = vunpack.c.h.b16 %v99
    %v206 = vunpack.c.l.b16 %v100
    %v207 = vunpack.c.h.b16 %v100
    %v208 = vunpack.c.l.b16 %v101
    %v209 = vunpack.c.h.b16 %v101
    %v210 = vunpack.c.l.b16 %v102
    %v211 = vunpack.c.h.b16 %v102
    %v212 = vunpack.c.l.b16 %v103
    %v213 = vunpack.c.h.b16 %v103
    %v214 = vunpack.c.l.b16 %v104
    %v215 = vunpack.c.h.b16 %v104
    %v216 = vunpack.c.l.b16 %v105
    %v217 = vunpack.c.h.b16 %v105
    %v218 = vunpack.c.l.b16 %v106
    %v219 = vunpack.c.h.b16 %v106
    %v220 = vunpack.c.l.b16 %v107
    %v221 = vunpack.c.h.b16 %v107
    %v222 = vunpack.c.l.b16 %v108
    %v223 = vunpack.c.h.b16 %v108
    %v224 = vunpack.c.l.b16 %v109
    %v225 = vunpack.c.h.b16 %v109
    %v226 = vunpack.c.l.b16 %v110
    %v227 = vunpack.c.h.b16 %v110
    %v228 = vunpack.c.l.b16 %v111
    %v229 = vunpack.c.h.b16 %v111
    %v230 = vunpack.c.l.b16 %v112
    %v231 = vunpack.c.h.b16 %v112
    %v232 = vunpack.c.l.b16 %v113
    %v233 = vunpack.c.h.b16 %v113
    %v234 = vpack.c.b16 %v174, %v170
    %v235 = vpack.c.b16 %v175, %v171
    %v236 = vpack.c.b16 %v176, %v172
    %v237 = vpack.c.b16 %v177, %v173
    %v238 = vpack.c.b16 %v182, %v178
    %v239 = vpack.c.b16 %v183, %v179
    %v240 = vpack.c.b16 %v184, %v180
    %v241 = vpack.c.b16 %v185, %v181
    %v242 = vpack.c.b16 %v190, %v186
    %v243 = vpack.c.b16 %v191, %v187
    %v244 = vpack.c.b16 %v192, %v188
    %v245 = vpack.c.b16 %v193, %v189
    %v246 = vpack.c.b16 %v198, %v194
    %v247 = vpack.c.b16 %v199, %v195
    %v248 = vpack.c.b16 %v200, %v196
    %v249 = vpack.c.b16 %v201, %v197
    %v250 = vpack.c.b16 %v206, %v202
    %v251 = vpack.c.b16 %v207, %v203
    %v252 = vpack.c.b16 %v208, %v204
    %v253 = vpack.c.b16 %v209, %v205
    %v254 = vpack.c.b16 %v214, %v210
    %v255 = vpack.c.b16 %v215, %v211
    %v256 = vpack.c.b16 %v216, %v212
    %v257 = vpack.c.b16 %v217, %v213
    %v258 = vpack.c.b16 %v222, %v218
    %v259 = vpack.c.b16 %v223, %v219
    %v260 = vpack.c.b16 %v224, %v220
    %v261 = vpack.c.b16 %v225, %v221
    %v262 = vpack.c.b16 %v230, %v226
    %v263 = vpack.c.b16 %v231, %v227
    %v264 = vpack.c.b16 %v232, %v228
    %v265 = vpack.c.b16 %v233, %v229
    %298 = vmatprep.subr.bf16.mxu0 %v235
    %299 = vmatpush1.bf16.msra.mxu0 %v234
    %300 = vmatprep.subr.bf16.mxu0 %v239
    %301 = vmatpush1.bf16.msra.mxu0 %v238
    %302 = vmatprep.subr.bf16.mxu0 %v243
    %303 = vmatpush1.bf16.msra.mxu0 %v242
    %304 = vmatprep.subr.bf16.mxu0 %v247
    %305 = vmatpush1.bf16.msra.mxu0 %v246
    %306 = vmatprep.subr.bf16.mxu0 %v251
    %307 = vmatpush1.bf16.msra.mxu0 %v250
    %308 = vmatprep.subr.bf16.mxu0 %v255
    %309 = vmatpush1.bf16.msra.mxu0 %v254
    %310 = vmatprep.subr.bf16.mxu0 %v259
    %311 = vmatpush1.bf16.msra.mxu0 %v258
    %312 = vmatprep.subr.bf16.mxu0 %v263
    %313 = vmatpush1.bf16.msra.mxu0 %v262
    %314 = vmatprep.subr.bf16.mxu0 0
    %315 = vmatpush1.bf16.msra.mxu0 0
    %316 = vmatprep.subr.bf16.mxu0 0
    %317 = vmatpush1.bf16.msra.mxu0 0
    %318 = vmatprep.subr.bf16.mxu0 0
    %319 = vmatpush1.bf16.msra.mxu0 0
    %320 = vmatprep.subr.bf16.mxu0 0
    %321 = vmatpush1.bf16.msra.mxu0 0
    %322 = vmatprep.subr.bf16.mxu0 0
    %323 = vmatpush1.bf16.msra.mxu0 0
    %324 = vmatprep.subr.bf16.mxu0 0
    %325 = vmatpush1.bf16.msra.mxu0 0
    %326 = vmatprep.subr.bf16.mxu0 0
    %327 = vmatpush1.bf16.msra.mxu0 0
    %328 = vmatprep.subr.bf16.mxu0 0
    %329 = vmatpush1.bf16.msra.mxu0 0
    %330 = vmatprep.mubr.bf16.mxu0 0
    %331 = vmatmul.mubr.bf16.gmra.mrb[0].mxu0 %v130
    %v332 = vpop.f32.mrb[0].mxu0
    %v333 = vadd.f32 0.0, %v332
    %v334 = vpop.f32.mrb[0].mxu0
    %v335 = vadd.f32 0.0, %v334
    %v336 = vpop.f32.mrb[0].mxu0
    %v337 = vadd.f32 0.0, %v336
    %v338 = vpop.f32.mrb[0].mxu0
    %v339 = vadd.f32 0.0, %v338
    %340 = vmatprep.mubr.bf16.mxu0 0
    %341 = vmatmul.mubr.bf16.gmra.mrb[0].mxu0 %v131
    %v342 = vpop.f32.mrb[0].mxu0
    %v343 = vadd.f32 0.0, %v342
    %v344 = vpop.f32.mrb[0].mxu0
    %v345 = vadd.f32 0.0, %v344
    %v346 = vpop.f32.mrb[0].mxu0
    %v347 = vadd.f32 0.0, %v346
    %v348 = vpop.f32.mrb[0].mxu0
    %v349 = vadd.f32 0.0, %v348
    %350 = vmatprep.mubr.bf16.mxu0 0
    %351 = vmatmul.mubr.bf16.gmra.mrb[0].mxu0 %v132
    %v352 = vpop.f32.mrb[0].mxu0
    %v353 = vadd.f32 0.0, %v352
    %v354 = vpop.f32.mrb[0].mxu0
    %v355 = vadd.f32 0.0, %v354
    %v356 = vpop.f32.mrb[0].mxu0
    %v357 = vadd.f32 0.0, %v356
    %v358 = vpop.f32.mrb[0].mxu0
    %v359 = vadd.f32 0.0, %v358
    %360 = vmatprep.mubr.bf16.mxu0 0
    %361 = vmatmul.mubr.bf16.gmra.mrb[0].mxu0 %v133
    %v362 = vpop.f32.mrb[0].mxu0
    %v363 = vadd.f32 0.0, %v362
    %v364 = vpop.f32.mrb[0].mxu0
    %v365 = vadd.f32 0.0, %v364
    %v366 = vpop.f32.mrb[0].mxu0
    %v367 = vadd.f32 0.0, %v366
    %v368 = vpop.f32.mrb[0].mxu0
    %v369 = vadd.f32 0.0, %v368
    %370 = vdwg.mxu0
    %371 = vmatprep.subr.bf16.mxu0 %v237
    %372 = vmatpush1.bf16.msra.mxu0 %v236
    %373 = vmatprep.subr.bf16.mxu0 %v241
    %374 = vmatpush1.bf16.msra.mxu0 %v240
    %375 = vmatprep.subr.bf16.mxu0 %v245
    %376 = vmatpush1.bf16.msra.mxu0 %v244
    %377 = vmatprep.subr.bf16.mxu0 %v249
    %378 = vmatpush1.bf16.msra.mxu0 %v248
    %379 = vmatprep.subr.bf16.mxu0 %v253
    %380 = vmatpush1.bf16.msra.mxu0 %v252
    %381 = vmatprep.subr.bf16.mxu0 %v257
    %382 = vmatpush1.bf16.msra.mxu0 %v256
    %383 = vmatprep.subr.bf16.mxu0 %v261
    %384 = vmatpush1.bf16.msra.mxu0 %v260
    %385 = vmatprep.subr.bf16.mxu0 %v265
    %386 = vmatpush1.bf16.msra.mxu0 %v264
    %387 = vmatprep.subr.bf16.mxu0 0
    %388 = vmatpush1.bf16.msra.mxu0 0
    %389 = vmatprep.subr.bf16.mxu0 0
    %390 = vmatpush1.bf16.msra.mxu0 0
    %391 = vmatprep.subr.bf16.mxu0 0
    %392 = vmatpush1.bf16.msra.mxu0 0
    %393 = vmatprep.subr.bf16.mxu0 0
    %394 = vmatpush1.bf16.msra.mxu0 0
    %395 = vmatprep.subr.bf16.mxu0 0
    %396 = vmatpush1.bf16.msra.mxu0 0
    %397 = vmatprep.subr.bf16.mxu0 0
    %398 = vmatpush1.bf16.msra.mxu0 0
    %399 = vmatprep.subr.bf16.mxu0 0
    %400 = vmatpush1.bf16.msra.mxu0 0
    %401 = vmatprep.subr.bf16.mxu0 0
    %402 = vmatpush1.bf16.msra.mxu0 0
    %403 = vmatprep.mubr.bf16.mxu0 0
    %404 = vmatmul.mubr.bf16.gmra.mrb[0].mxu0 %v130
    %v405 = vpop.f32.mrb[0].mxu0
    %v406 = vadd.f32 0.0, %v405
    %v407 = vpop.f32.mrb[0].mxu0
    %v408 = vadd.f32 0.0, %v407
    %v409 = vpop.f32.mrb[0].mxu0
    %v410 = vadd.f32 0.0, %v409
    %v411 = vpop.f32.mrb[0].mxu0
    %v412 = vadd.f32 0.0, %v411
    %413 = vmatprep.mubr.bf16.mxu0 0
    %414 = vmatmul.mubr.bf16.gmra.mrb[0].mxu0 %v131
    %v415 = vpop.f32.mrb[0].mxu0
    %v416 = vadd.f32 0.0, %v415
    %v417 = vpop.f32.mrb[0].mxu0
    %v418 = vadd.f32 0.0, %v417
    %v419 = vpop.f32.mrb[0].mxu0
    %v420 = vadd.f32 0.0, %v419
    %v421 = vpop.f32.mrb[0].mxu0
    %v422 = vadd.f32 0.0, %v421
    %423 = vmatprep.mubr.bf16.mxu0 0
    %424 = vmatmul.mubr.bf16.gmra.mrb[0].mxu0 %v132
    %v425 = vpop.f32.mrb[0].mxu0
    %v426 = vadd.f32 0.0, %v425
    %v427 = vpop.f32.mrb[0].mxu0
    %v428 = vadd.f32 0.0, %v427
    %v429 = vpop.f32.mrb[0].mxu0
    %v430 = vadd.f32 0.0, %v429
    %v431 = vpop.f32.mrb[0].mxu0
    %v432 = vadd.f32 0.0, %v431
    %433 = vmatprep.mubr.bf16.mxu0 0
    %434 = vmatmul.mubr.bf16.gmra.mrb[0].mxu0 %v133
    %v435 = vpop.f32.mrb[0].mxu0
    %v436 = vadd.f32 0.0, %v435
    %v437 = vpop.f32.mrb[0].mxu0
    %v438 = vadd.f32 0.0, %v437
    %v439 = vpop.f32.mrb[0].mxu0
    %v440 = vadd.f32 0.0, %v439
    %v441 = vpop.f32.mrb[0].mxu0
    %v442 = vadd.f32 0.0, %v441
    %443 = vdwg.mxu0
    %v444 = vld [vmem:[#allocation8] sm:$0xff]
    %v445 = vld [vmem:[#allocation8 + $0x8] sm:$0xff]
    %v446 = vld [vmem:[#allocation8 + $0x10] sm:$0xff]
    %v447 = vld [vmem:[#allocation8 + $0x18] sm:$0xff]
    %v448 = vld [vmem:[#allocation8 + $0x20] sm:$0xff]
    %v449 = vld [vmem:[#allocation8 + $0x28] sm:$0xff]
    %v450 = vld [vmem:[#allocation8 + $0x30] sm:$0xff]
    %v451 = vld [vmem:[#allocation8 + $0x38] sm:$0xff]
    %v452 = vld [vmem:[#allocation8 + $0x40] sm:$0xff]
    %v453 = vld [vmem:[#allocation8 + $0x48] sm:$0xff]
    %v454 = vld [vmem:[#allocation8 + $0x50] sm:$0xff]
    %v455 = vld [vmem:[#allocation8 + $0x58] sm:$0xff]
    %v456 = vld [vmem:[#allocation8 + $0x60] sm:$0xff]
    %v457 = vld [vmem:[#allocation8 + $0x68] sm:$0xff]
    %v458 = vld [vmem:[#allocation8 + $0x70] sm:$0xff]
    %v459 = vld [vmem:[#allocation8 + $0x78] sm:$0xff]
    %v460 = vld [vmem:[#allocation8 + $0x80] sm:$0xff]
    %v461 = vld [vmem:[#allocation8 + $0x88] sm:$0xff]
    %v462 = vld [vmem:[#allocation8 + $0x90] sm:$0xff]
    %v463 = vld [vmem:[#allocation8 + $0x98] sm:$0xff]
    %v464 = vld [vmem:[#allocation8 + $0xa0] sm:$0xff]
    %v465 = vld [vmem:[#allocation8 + $0xa8] sm:$0xff]
    %v466 = vld [vmem:[#allocation8 + $0xb0] sm:$0xff]
    %v467 = vld [vmem:[#allocation8 + $0xb8] sm:$0xff]
    %v468 = vld [vmem:[#allocation8 + $0xc0] sm:$0xff]
    %v469 = vld [vmem:[#allocation8 + $0xc8] sm:$0xff]
    %v470 = vld [vmem:[#allocation8 + $0xd0] sm:$0xff]
    %v471 = vld [vmem:[#allocation8 + $0xd8] sm:$0xff]
    %v472 = vld [vmem:[#allocation8 + $0xe0] sm:$0xff]
    %v473 = vld [vmem:[#allocation8 + $0xe8] sm:$0xff]
    %v474 = vld [vmem:[#allocation8 + $0xf0] sm:$0xff]
    %v475 = vld [vmem:[#allocation8 + $0xf8] sm:$0xff]
    %v508 = vunpack.c.l.b16 %v444
    %v509 = vunpack.c.h.b16 %v444
    %v510 = vunpack.c.l.b16 %v445
    %v511 = vunpack.c.h.b16 %v445
    %v512 = vunpack.c.l.b16 %v446
    %v513 = vunpack.c.h.b16 %v446
    %v514 = vunpack.c.l.b16 %v447
    %v515 = vunpack.c.h.b16 %v447
    %v516 = vunpack.c.l.b16 %v448
    %v517 = vunpack.c.h.b16 %v448
    %v518 = vunpack.c.l.b16 %v449
    %v519 = vunpack.c.h.b16 %v449
    %v520 = vunpack.c.l.b16 %v450
    %v521 = vunpack.c.h.b16 %v450
    %v522 = vunpack.c.l.b16 %v451
    %v523 = vunpack.c.h.b16 %v451
    %v524 = vunpack.c.l.b16 %v452
    %v525 = vunpack.c.h.b16 %v452
    %v526 = vunpack.c.l.b16 %v453
    %v527 = vunpack.c.h.b16 %v453
    %v528 = vunpack.c.l.b16 %v454
    %v529 = vunpack.c.h.b16 %v454
    %v530 = vunpack.c.l.b16 %v455
    %v531 = vunpack.c.h.b16 %v455
    %v532 = vunpack.c.l.b16 %v456
    %v533 = vunpack.c.h.b16 %v456
    %v534 = vunpack.c.l.b16 %v457
    %v535 = vunpack.c.h.b16 %v457
    %v536 = vunpack.c.l.b16 %v458
    %v537 = vunpack.c.h.b16 %v458
    %v538 = vunpack.c.l.b16 %v459
    %v539 = vunpack.c.h.b16 %v459
    %v540 = vunpack.c.l.b16 %v460
    %v541 = vunpack.c.h.b16 %v460
    %v542 = vunpack.c.l.b16 %v461
    %v543 = vunpack.c.h.b16 %v461
    %v544 = vunpack.c.l.b16 %v462
    %v545 = vunpack.c.h.b16 %v462
    %v546 = vunpack.c.l.b16 %v463
    %v547 = vunpack.c.h.b16 %v463
    %v548 = vunpack.c.l.b16 %v464
    %v549 = vunpack.c.h.b16 %v464
    %v550 = vunpack.c.l.b16 %v465
    %v551 = vunpack.c.h.b16 %v465
    %v552 = vunpack.c.l.b16 %v466
    %v553 = vunpack.c.h.b16 %v466
    %v554 = vunpack.c.l.b16 %v467
    %v555 = vunpack.c.h.b16 %v467
    %v556 = vunpack.c.l.b16 %v468
    %v557 = vunpack.c.h.b16 %v468
    %v558 = vunpack.c.l.b16 %v469
    %v559 = vunpack.c.h.b16 %v469
    %v560 = vunpack.c.l.b16 %v470
    %v561 = vunpack.c.h.b16 %v470
    %v562 = vunpack.c.l.b16 %v471
    %v563 = vunpack.c.h.b16 %v471
    %v564 = vunpack.c.l.b16 %v472
    %v565 = vunpack.c.h.b16 %v472
    %v566 = vunpack.c.l.b16 %v473
    %v567 = vunpack.c.h.b16 %v473
    %v568 = vunpack.c.l.b16 %v474
    %v569 = vunpack.c.h.b16 %v474
    %v570 = vunpack.c.l.b16 %v475
    %v571 = vunpack.c.h.b16 %v475
    %v572 = vpack.c.b16 %v512, %v508
    %v573 = vpack.c.b16 %v513, %v509
    %v574 = vpack.c.b16 %v514, %v510
    %v575 = vpack.c.b16 %v515, %v511
    %v576 = vpack.c.b16 %v520, %v516
    %v577 = vpack.c.b16 %v521, %v517
    %v578 = vpack.c.b16 %v522, %v518
    %v579 = vpack.c.b16 %v523, %v519
    %v580 = vpack.c.b16 %v528, %v524
    %v581 = vpack.c.b16 %v529, %v525
    %v582 = vpack.c.b16 %v530, %v526
    %v583 = vpack.c.b16 %v531, %v527
    %v584 = vpack.c.b16 %v536, %v532
    %v585 = vpack.c.b16 %v537, %v533
    %v586 = vpack.c.b16 %v538, %v534
    %v587 = vpack.c.b16 %v539, %v535
    %v588 = vpack.c.b16 %v544, %v540
    %v589 = vpack.c.b16 %v545, %v541
    %v590 = vpack.c.b16 %v546, %v542
    %v591 = vpack.c.b16 %v547, %v543
    %v592 = vpack.c.b16 %v552, %v548
    %v593 = vpack.c.b16 %v553, %v549
    %v594 = vpack.c.b16 %v554, %v550
    %v595 = vpack.c.b16 %v555, %v551
    %v596 = vpack.c.b16 %v560, %v556
    %v597 = vpack.c.b16 %v561, %v557
    %v598 = vpack.c.b16 %v562, %v558
    %v599 = vpack.c.b16 %v563, %v559
    %v600 = vpack.c.b16 %v568, %v564
    %v601 = vpack.c.b16 %v569, %v565
    %v602 = vpack.c.b16 %v570, %v566
    %v603 = vpack.c.b16 %v571, %v567
    %636 = vmatprep.subr.bf16.mxu0 %v573
    %637 = vmatpush1.bf16.msra.mxu0 %v572
    %638 = vmatprep.subr.bf16.mxu0 %v577
    %639 = vmatpush1.bf16.msra.mxu0 %v576
    %640 = vmatprep.subr.bf16.mxu0 %v581
    %641 = vmatpush1.bf16.msra.mxu0 %v580
    %642 = vmatprep.subr.bf16.mxu0 %v585
    %643 = vmatpush1.bf16.msra.mxu0 %v584
    %644 = vmatprep.subr.bf16.mxu0 %v589
    %645 = vmatpush1.bf16.msra.mxu0 %v588
    %646 = vmatprep.subr.bf16.mxu0 %v593
    %647 = vmatpush1.bf16.msra.mxu0 %v592
    %648 = vmatprep.subr.bf16.mxu0 %v597
    %649 = vmatpush1.bf16.msra.mxu0 %v596
    %650 = vmatprep.subr.bf16.mxu0 %v601
    %651 = vmatpush1.bf16.msra.mxu0 %v600
    %652 = vmatprep.subr.bf16.mxu0 0
    %653 = vmatpush1.bf16.msra.mxu0 0
    %654 = vmatprep.subr.bf16.mxu0 0
    %655 = vmatpush1.bf16.msra.mxu0 0
    %656 = vmatprep.subr.bf16.mxu0 0
    %657 = vmatpush1.bf16.msra.mxu0 0
    %658 = vmatprep.subr.bf16.mxu0 0
    %659 = vmatpush1.bf16.msra.mxu0 0
    %660 = vmatprep.subr.bf16.mxu0 0
    %661 = vmatpush1.bf16.msra.mxu0 0
    %662 = vmatprep.subr.bf16.mxu0 0
    %663 = vmatpush1.bf16.msra.mxu0 0
    %664 = vmatprep.subr.bf16.mxu0 0
    %665 = vmatpush1.bf16.msra.mxu0 0
    %666 = vmatprep.subr.bf16.mxu0 0
    %667 = vmatpush1.bf16.msra.mxu0 0
    %668 = vmatprep.mubr.bf16.mxu0 0
    %669 = vmatmul.mubr.bf16.gmra.mrb[0].mxu0 %v130
    %v670 = vpop.f32.mrb[0].mxu0
    %v671 = vadd.f32 0.0, %v670
    %v672 = vpop.f32.mrb[0].mxu0
    %v673 = vadd.f32 0.0, %v672
    %v674 = vpop.f32.mrb[0].mxu0
    %v675 = vadd.f32 0.0, %v674
    %v676 = vpop.f32.mrb[0].mxu0
    %v677 = vadd.f32 0.0, %v676
    %678 = vmatprep.mubr.bf16.mxu0 0
    %679 = vmatmul.mubr.bf16.gmra.mrb[0].mxu0 %v131
    %v680 = vpop.f32.mrb[0].mxu0
    %v681 = vadd.f32 0.0, %v680
    %v682 = vpop.f32.mrb[0].mxu0
    %v683 = vadd.f32 0.0, %v682
    %v684 = vpop.f32.mrb[0].mxu0
    %v685 = vadd.f32 0.0, %v684
    %v686 = vpop.f32.mrb[0].mxu0
    %v687 = vadd.f32 0.0, %v686
    %688 = vmatprep.mubr.bf16.mxu0 0
    %689 = vmatmul.mubr.bf16.gmra.mrb[0].mxu0 %v132
    %v690 = vpop.f32.mrb[0].mxu0
    %v691 = vadd.f32 0.0, %v690
    %v692 = vpop.f32.mrb[0].mxu0
    %v693 = vadd.f32 0.0, %v692
    %v694 = vpop.f32.mrb[0].mxu0
    %v695 = vadd.f32 0.0, %v694
    %v696 = vpop.f32.mrb[0].mxu0
    %v697 = vadd.f32 0.0, %v696
    %698 = vmatprep.mubr.bf16.mxu0 0
    %699 = vmatmul.mubr.bf16.gmra.mrb[0].mxu0 %v133
    %v700 = vpop.f32.mrb[0].mxu0
    %v701 = vadd.f32 0.0, %v700
    %v702 = vpop.f32.mrb[0].mxu0
    %v703 = vadd.f32 0.0, %v702
    %v704 = vpop.f32.mrb[0].mxu0
    %v705 = vadd.f32 0.0, %v704
    %v706 = vpop.f32.mrb[0].mxu0
    %v707 = vadd.f32 0.0, %v706
    %708 = vdwg.mxu0
    %709 = vmatprep.subr.bf16.mxu0 %v575
    %710 = vmatpush1.bf16.msra.mxu0 %v574
    %711 = vmatprep.subr.bf16.mxu0 %v579
    %712 = vmatpush1.bf16.msra.mxu0 %v578
    %713 = vmatprep.subr.bf16.mxu0 %v583
    %714 = vmatpush1.bf16.msra.mxu0 %v582
    %715 = vmatprep.subr.bf16.mxu0 %v587
    %716 = vmatpush1.bf16.msra.mxu0 %v586
    %717 = vmatprep.subr.bf16.mxu0 %v591
    %718 = vmatpush1.bf16.msra.mxu0 %v590
    %719 = vmatprep.subr.bf16.mxu0 %v595
    %720 = vmatpush1.bf16.msra.mxu0 %v594
    %721 = vmatprep.subr.bf16.mxu0 %v599
    %722 = vmatpush1.bf16.msra.mxu0 %v598
    %723 = vmatprep.subr.bf16.mxu0 %v603
    %724 = vmatpush1.bf16.msra.mxu0 %v602
    %725 = vmatprep.subr.bf16.mxu0 0
    %726 = vmatpush1.bf16.msra.mxu0 0
    %727 = vmatprep.subr.bf16.mxu0 0
    %728 = vmatpush1.bf16.msra.mxu0 0
    %729 = vmatprep.subr.bf16.mxu0 0
    %730 = vmatpush1.bf16.msra.mxu0 0
    %731 = vmatprep.subr.bf16.mxu0 0
    %732 = vmatpush1.bf16.msra.mxu0 0
    %733 = vmatprep.subr.bf16.mxu0 0
    %734 = vmatpush1.bf16.msra.mxu0 0
    %735 = vmatprep.subr.bf16.mxu0 0
    %736 = vmatpush1.bf16.msra.mxu0 0
    %737 = vmatprep.subr.bf16.mxu0 0
    %738 = vmatpush1.bf16.msra.mxu0 0
    %739 = vmatprep.subr.bf16.mxu0 0
    %740 = vmatpush1.bf16.msra.mxu0 0
    %741 = vmatprep.mubr.bf16.mxu0 0
    %742 = vmatmul.mubr.bf16.gmra.mrb[0].mxu0 %v130
    %v743 = vpop.f32.mrb[0].mxu0
    %v744 = vadd.f32 0.0, %v743
    %v745 = vpop.f32.mrb[0].mxu0
    %v746 = vadd.f32 0.0, %v745
    %v747 = vpop.f32.mrb[0].mxu0
    %v748 = vadd.f32 0.0, %v747
    %v749 = vpop.f32.mrb[0].mxu0
    %v750 = vadd.f32 0.0, %v749
    %751 = vmatprep.mubr.bf16.mxu0 0
    %752 = vmatmul.mubr.bf16.gmra.mrb[0].mxu0 %v131
    %v753 = vpop.f32.mrb[0].mxu0
    %v754 = vadd.f32 0.0, %v753
    %v755 = vpop.f32.mrb[0].mxu0
    %v756 = vadd.f32 0.0, %v755
    %v757 = vpop.f32.mrb[0].mxu0
    %v758 = vadd.f32 0.0, %v757
    %v759 = vpop.f32.mrb[0].mxu0
    %v760 = vadd.f32 0.0, %v759
    %761 = vmatprep.mubr.bf16.mxu0 0
    %762 = vmatmul.mubr.bf16.gmra.mrb[0].mxu0 %v132
    %v763 = vpop.f32.mrb[0].mxu0
    %v764 = vadd.f32 0.0, %v763
    %v765 = vpop.f32.mrb[0].mxu0
    %v766 = vadd.f32 0.0, %v765
    %v767 = vpop.f32.mrb[0].mxu0
    %v768 = vadd.f32 0.0, %v767
    %v769 = vpop.f32.mrb[0].mxu0
    %v770 = vadd.f32 0.0, %v769
    %771 = vmatprep.mubr.bf16.mxu0 0
    %772 = vmatmul.mubr.bf16.gmra.mrb[0].mxu0 %v133
    %v773 = vpop.f32.mrb[0].mxu0
    %v774 = vadd.f32 0.0, %v773
    %v775 = vpop.f32.mrb[0].mxu0
    %v776 = vadd.f32 0.0, %v775
    %v777 = vpop.f32.mrb[0].mxu0
    %v778 = vadd.f32 0.0, %v777
    %v779 = vpop.f32.mrb[0].mxu0
    %v780 = vadd.f32 0.0, %v779
    %781 = vdwg.mxu0
    %v782 = vxor.u32 %v333, 2147483648
    %v783 = vxor.u32 %v335, 2147483648
    %v784 = vxor.u32 %v406, 2147483648
    %v785 = vxor.u32 %v408, 2147483648
    %v786 = vxor.u32 %v337, 2147483648
    %v787 = vxor.u32 %v339, 2147483648
    %v788 = vxor.u32 %v410, 2147483648
    %v789 = vxor.u32 %v412, 2147483648
    %v790 = vxor.u32 %v343, 2147483648
    %v791 = vxor.u32 %v345, 2147483648
    %v792 = vxor.u32 %v416, 2147483648
    %v793 = vxor.u32 %v418, 2147483648
    %v794 = vxor.u32 %v347, 2147483648
    %v795 = vxor.u32 %v349, 2147483648
    %v796 = vxor.u32 %v420, 2147483648
    %v797 = vxor.u32 %v422, 2147483648
    %v798 = vxor.u32 %v353, 2147483648
    %v799 = vxor.u32 %v355, 2147483648
    %v800 = vxor.u32 %v426, 2147483648
    %v801 = vxor.u32 %v428, 2147483648
    %v802 = vxor.u32 %v357, 2147483648
    %v803 = vxor.u32 %v359, 2147483648
    %v804 = vxor.u32 %v430, 2147483648
    %v805 = vxor.u32 %v432, 2147483648
    %v806 = vxor.u32 %v363, 2147483648
    %v807 = vxor.u32 %v365, 2147483648
    %v808 = vxor.u32 %v436, 2147483648
    %v809 = vxor.u32 %v438, 2147483648
    %v810 = vxor.u32 %v367, 2147483648
    %v811 = vxor.u32 %v369, 2147483648
    %v812 = vxor.u32 %v440, 2147483648
    %v813 = vxor.u32 %v442, 2147483648
    %v814 = vmul.f32 %v782, 1.442695
    %v815 = vpow.pop %v814
    %v816 = vmul.f32 %v783, 1.442695
    %v817 = vpow.pop %v816
    %v818 = vmul.f32 %v784, 1.442695
    %v819 = vpow.pop %v818
    %v820 = vmul.f32 %v785, 1.442695
    %v821 = vpow.pop %v820
    %v822 = vmul.f32 %v786, 1.442695
    %v823 = vpow.pop %v822
    %v824 = vmul.f32 %v787, 1.442695
    %v825 = vpow.pop %v824
    %v826 = vmul.f32 %v788, 1.442695
    %v827 = vpow.pop %v826
    %v828 = vmul.f32 %v789, 1.442695
    %v829 = vpow.pop %v828
    %v830 = vmul.f32 %v790, 1.442695
    %v831 = vpow.pop %v830
    %v832 = vmul.f32 %v791, 1.442695
    %v833 = vpow.pop %v832
    %v834 = vmul.f32 %v792, 1.442695
    %v835 = vpow.pop %v834
    %v836 = vmul.f32 %v793, 1.442695
    %v837 = vpow.pop %v836
    %v838 = vmul.f32 %v794, 1.442695
    %v839 = vpow.pop %v838
    %v840 = vmul.f32 %v795, 1.442695
    %v841 = vpow.pop %v840
    %v842 = vmul.f32 %v796, 1.442695
    %v843 = vpow.pop %v842
    %v844 = vmul.f32 %v797, 1.442695
    %v845 = vpow.pop %v844
    %v846 = vmul.f32 %v798, 1.442695
    %v847 = vpow.pop %v846
    %v848 = vmul.f32 %v799, 1.442695
    %v849 = vpow.pop %v848
    %v850 = vmul.f32 %v800, 1.442695
    %v851 = vpow.pop %v850
    %v852 = vmul.f32 %v801, 1.442695
    %v853 = vpow.pop %v852
    %v854 = vmul.f32 %v802, 1.442695
    %v855 = vpow.pop %v854
    %v856 = vmul.f32 %v803, 1.442695
    %v857 = vpow.pop %v856
    %v858 = vmul.f32 %v804, 1.442695
    %v859 = vpow.pop %v858
    %v860 = vmul.f32 %v805, 1.442695
    %v861 = vpow.pop %v860
    %v862 = vmul.f32 %v806, 1.442695
    %v863 = vpow.pop %v862
    %v864 = vmul.f32 %v807, 1.442695
    %v865 = vpow.pop %v864
    %v866 = vmul.f32 %v808, 1.442695
    %v867 = vpow.pop %v866
    %v868 = vmul.f32 %v809, 1.442695
    %v869 = vpow.pop %v868
    %v870 = vmul.f32 %v810, 1.442695
    %v871 = vpow.pop %v870
    %v872 = vmul.f32 %v811, 1.442695
    %v873 = vpow.pop %v872
    %v874 = vmul.f32 %v812, 1.442695
    %v875 = vpow.pop %v874
    %v876 = vmul.f32 %v813, 1.442695
    %v877 = vpow.pop %v876
    %v878 = vadd.f32 %v815, 1.0
    %v879 = vadd.f32 %v817, 1.0
    %v880 = vadd.f32 %v819, 1.0
    %v881 = vadd.f32 %v821, 1.0
    %v882 = vadd.f32 %v823, 1.0
    %v883 = vadd.f32 %v825, 1.0
    %v884 = vadd.f32 %v827, 1.0
    %v885 = vadd.f32 %v829, 1.0
    %v886 = vadd.f32 %v831, 1.0
    %v887 = vadd.f32 %v833, 1.0
    %v888 = vadd.f32 %v835, 1.0
    %v889 = vadd.f32 %v837, 1.0
    %v890 = vadd.f32 %v839, 1.0
    %v891 = vadd.f32 %v841, 1.0
    %v892 = vadd.f32 %v843, 1.0
    %v893 = vadd.f32 %v845, 1.0
    %v894 = vadd.f32 %v847, 1.0
    %v895 = vadd.f32 %v849, 1.0
    %v896 = vadd.f32 %v851, 1.0
    %v897 = vadd.f32 %v853, 1.0
    %v898 = vadd.f32 %v855, 1.0
    %v899 = vadd.f32 %v857, 1.0
    %v900 = vadd.f32 %v859, 1.0
    %v901 = vadd.f32 %v861, 1.0
    %v902 = vadd.f32 %v863, 1.0
    %v903 = vadd.f32 %v865, 1.0
    %v904 = vadd.f32 %v867, 1.0
    %v905 = vadd.f32 %v869, 1.0
    %v906 = vadd.f32 %v871, 1.0
    %v907 = vadd.f32 %v873, 1.0
    %v908 = vadd.f32 %v875, 1.0
    %v909 = vadd.f32 %v877, 1.0
    %v910 = vrcp.pop %v878
    %v911 = vmul.f32 1.0, %v910
    %v912 = vrcp.pop %v879
    %v913 = vmul.f32 1.0, %v912
    %v914 = vrcp.pop %v880
    %v915 = vmul.f32 1.0, %v914
    %v916 = vrcp.pop %v881
    %v917 = vmul.f32 1.0, %v916
    %v918 = vrcp.pop %v882
    %v919 = vmul.f32 1.0, %v918
    %v920 = vrcp.pop %v883
    %v921 = vmul.f32 1.0, %v920
    %v922 = vrcp.pop %v884
    %v923 = vmul.f32 1.0, %v922
    %v924 = vrcp.pop %v885
    %v925 = vmul.f32 1.0, %v924
    %v926 = vrcp.pop %v886
    %v927 = vmul.f32 1.0, %v926
    %v928 = vrcp.pop %v887
    %v929 = vmul.f32 1.0, %v928
    %v930 = vrcp.pop %v888
    %v931 = vmul.f32 1.0, %v930
    %v932 = vrcp.pop %v889
    %v933 = vmul.f32 1.0, %v932
    %v934 = vrcp.pop %v890
    %v935 = vmul.f32 1.0, %v934
    %v936 = vrcp.pop %v891
    %v937 = vmul.f32 1.0, %v936
    %v938 = vrcp.pop %v892
    %v939 = vmul.f32 1.0, %v938
    %v940 = vrcp.pop %v893
    %v941 = vmul.f32 1.0, %v940
    %v942 = vrcp.pop %v894
    %v943 = vmul.f32 1.0, %v942
    %v944 = vrcp.pop %v895
    %v945 = vmul.f32 1.0, %v944
    %v946 = vrcp.pop %v896
    %v947 = vmul.f32 1.0, %v946
    %v948 = vrcp.pop %v897
    %v949 = vmul.f32 1.0, %v948
    %v950 = vrcp.pop %v898
    %v951 = vmul.f32 1.0, %v950
    %v952 = vrcp.pop %v899
    %v953 = vmul.f32 1.0, %v952
    %v954 = vrcp.pop %v900
    %v955 = vmul.f32 1.0, %v954
    %v956 = vrcp.pop %v901
    %v957 = vmul.f32 1.0, %v956
    %v958 = vrcp.pop %v902
    %v959 = vmul.f32 1.0, %v958
    %v960 = vrcp.pop %v903
    %v961 = vmul.f32 1.0, %v960
    %v962 = vrcp.pop %v904
    %v963 = vmul.f32 1.0, %v962
    %v964 = vrcp.pop %v905
    %v965 = vmul.f32 1.0, %v964
    %v966 = vrcp.pop %v906
    %v967 = vmul.f32 1.0, %v966
    %v968 = vrcp.pop %v907
    %v969 = vmul.f32 1.0, %v968
    %v970 = vrcp.pop %v908
    %v971 = vmul.f32 1.0, %v970
    %v972 = vrcp.pop %v909
    %v973 = vmul.f32 1.0, %v972
    %v974 = vmul.f32 %v333, %v911
    %v975 = vmul.f32 %v335, %v913
    %v976 = vmul.f32 %v406, %v915
    %v977 = vmul.f32 %v408, %v917
    %v978 = vmul.f32 %v337, %v919
    %v979 = vmul.f32 %v339, %v921
    %v980 = vmul.f32 %v410, %v923
    %v981 = vmul.f32 %v412, %v925
    %v982 = vmul.f32 %v343, %v927
    %v983 = vmul.f32 %v345, %v929
    %v984 = vmul.f32 %v416, %v931
    %v985 = vmul.f32 %v418, %v933
    %v986 = vmul.f32 %v347, %v935
    %v987 = vmul.f32 %v349, %v937
    %v988 = vmul.f32 %v420, %v939
    %v989 = vmul.f32 %v422, %v941
    %v990 = vmul.f32 %v353, %v943
    %v991 = vmul.f32 %v355, %v945
    %v992 = vmul.f32 %v426, %v947
    %v993 = vmul.f32 %v428, %v949
    %v994 = vmul.f32 %v357, %v951
    %v995 = vmul.f32 %v359, %v953
    %v996 = vmul.f32 %v430, %v955
    %v997 = vmul.f32 %v432, %v957
    %v998 = vmul.f32 %v363, %v959
    %v999 = vmul.f32 %v365, %v961
    %v1000 = vmul.f32 %v436, %v963
    %v1001 = vmul.f32 %v438, %v965
    %v1002 = vmul.f32 %v367, %v967
    %v1003 = vmul.f32 %v369, %v969
    %v1004 = vmul.f32 %v440, %v971
    %v1005 = vmul.f32 %v442, %v973
    %v1006 = vmul.f32 %v974, %v671
    %v1007 = vmul.f32 %v975, %v673
    %v1008 = vmul.f32 %v976, %v744
    %v1009 = vmul.f32 %v977, %v746
    %v1010 = vmul.f32 %v978, %v675
    %v1011 = vmul.f32 %v979, %v677
    %v1012 = vmul.f32 %v980, %v748
    %v1013 = vmul.f32 %v981, %v750
    %v1014 = vmul.f32 %v982, %v681
    %v1015 = vmul.f32 %v983, %v683
    %v1016 = vmul.f32 %v984, %v754
    %v1017 = vmul.f32 %v985, %v756
    %v1018 = vmul.f32 %v986, %v685
    %v1019 = vmul.f32 %v987, %v687
    %v1020 = vmul.f32 %v988, %v758
    %v1021 = vmul.f32 %v989, %v760
    %v1022 = vmul.f32 %v990, %v691
    %v1023 = vmul.f32 %v991, %v693
    %v1024 = vmul.f32 %v992, %v764
    %v1025 = vmul.f32 %v993, %v766
    %v1026 = vmul.f32 %v994, %v695
    %v1027 = vmul.f32 %v995, %v697
    %v1028 = vmul.f32 %v996, %v768
    %v1029 = vmul.f32 %v997, %v770
    %v1030 = vmul.f32 %v998, %v701
    %v1031 = vmul.f32 %v999, %v703
    %v1032 = vmul.f32 %v1000, %v774
    %v1033 = vmul.f32 %v1001, %v776
    %v1034 = vmul.f32 %v1002, %v705
    %v1035 = vmul.f32 %v1003, %v707
    %v1036 = vmul.f32 %v1004, %v778
    %v1037 = vmul.f32 %v1005, %v780
    %v1038 = vpack.c.bf16 %v1010, %v1006
    %v1039 = vpack.c.bf16 %v1011, %v1007
    %v1040 = vpack.c.bf16 %v1012, %v1008
    %v1041 = vpack.c.bf16 %v1013, %v1009
    %v1042 = vpack.c.bf16 %v1018, %v1014
    %v1043 = vpack.c.bf16 %v1019, %v1015
    %v1044 = vpack.c.bf16 %v1020, %v1016
    %v1045 = vpack.c.bf16 %v1021, %v1017
    %v1046 = vpack.c.bf16 %v1026, %v1022
    %v1047 = vpack.c.bf16 %v1027, %v1023
    %v1048 = vpack.c.bf16 %v1028, %v1024
    %v1049 = vpack.c.bf16 %v1029, %v1025
    %v1050 = vpack.c.bf16 %v1034, %v1030
    %v1051 = vpack.c.bf16 %v1035, %v1031
    %v1052 = vpack.c.bf16 %v1036, %v1032
    %v1053 = vpack.c.bf16 %v1037, %v1033
    %v1054 = vld [vmem:[#allocation9] sm:$0xf]
    %v1055 = vld [vmem:[#allocation9 + $0x4] sm:$0xf]
    %v1056 = vld [vmem:[#allocation9 + $0x8] sm:$0xf]
    %v1057 = vld [vmem:[#allocation9 + $0xc] sm:$0xf]
    %v1058 = vld [vmem:[#allocation9 + $0x10] sm:$0xf]
    %v1059 = vld [vmem:[#allocation9 + $0x14] sm:$0xf]
    %v1060 = vld [vmem:[#allocation9 + $0x18] sm:$0xf]
    %v1061 = vld [vmem:[#allocation9 + $0x1c] sm:$0xf]
    %v1062 = vld [vmem:[#allocation9 + $0x20] sm:$0xf]
    %v1063 = vld [vmem:[#allocation9 + $0x24] sm:$0xf]
    %v1064 = vld [vmem:[#allocation9 + $0x28] sm:$0xf]
    %v1065 = vld [vmem:[#allocation9 + $0x2c] sm:$0xf]
    %v1066 = vld [vmem:[#allocation9 + $0x30] sm:$0xf]
    %v1067 = vld [vmem:[#allocation9 + $0x34] sm:$0xf]
    %v1068 = vld [vmem:[#allocation9 + $0x38] sm:$0xf]
    %v1069 = vld [vmem:[#allocation9 + $0x3c] sm:$0xf]
    %v1070 = vld [vmem:[#allocation9 + $0x40] sm:$0xf]
    %v1071 = vld [vmem:[#allocation9 + $0x44] sm:$0xf]
    %v1072 = vld [vmem:[#allocation9 + $0x48] sm:$0xf]
    %v1073 = vld [vmem:[#allocation9 + $0x4c] sm:$0xf]
    %v1074 = vld [vmem:[#allocation9 + $0x50] sm:$0xf]
    %v1075 = vld [vmem:[#allocation9 + $0x54] sm:$0xf]
    %v1076 = vld [vmem:[#allocation9 + $0x58] sm:$0xf]
    %v1077 = vld [vmem:[#allocation9 + $0x5c] sm:$0xf]
    %v1078 = vld [vmem:[#allocation9 + $0x60] sm:$0xf]
    %v1079 = vld [vmem:[#allocation9 + $0x64] sm:$0xf]
    %v1080 = vld [vmem:[#allocation9 + $0x68] sm:$0xf]
    %v1081 = vld [vmem:[#allocation9 + $0x6c] sm:$0xf]
    %v1082 = vld [vmem:[#allocation9 + $0x70] sm:$0xf]
    %v1083 = vld [vmem:[#allocation9 + $0x74] sm:$0xf]
    %v1084 = vld [vmem:[#allocation9 + $0x78] sm:$0xf]
    %v1085 = vld [vmem:[#allocation9 + $0x7c] sm:$0xf]
    %v1086 = vld [vmem:[#allocation9 + $0x80] sm:$0xf]
    %v1087 = vld [vmem:[#allocation9 + $0x84] sm:$0xf]
    %v1088 = vld [vmem:[#allocation9 + $0x88] sm:$0xf]
    %v1089 = vld [vmem:[#allocation9 + $0x8c] sm:$0xf]
    %v1090 = vld [vmem:[#allocation9 + $0x90] sm:$0xf]
    %v1091 = vld [vmem:[#allocation9 + $0x94] sm:$0xf]
    %v1092 = vld [vmem:[#allocation9 + $0x98] sm:$0xf]
    %v1093 = vld [vmem:[#allocation9 + $0x9c] sm:$0xf]
    %v1094 = vld [vmem:[#allocation9 + $0xa0] sm:$0xf]
    %v1095 = vld [vmem:[#allocation9 + $0xa4] sm:$0xf]
    %v1096 = vld [vmem:[#allocation9 + $0xa8] sm:$0xf]
    %v1097 = vld [vmem:[#allocation9 + $0xac] sm:$0xf]
    %v1098 = vld [vmem:[#allocation9 + $0xb0] sm:$0xf]
    %v1099 = vld [vmem:[#allocation9 + $0xb4] sm:$0xf]
    %v1100 = vld [vmem:[#allocation9 + $0xb8] sm:$0xf]
    %v1101 = vld [vmem:[#allocation9 + $0xbc] sm:$0xf]
    %v1102 = vld [vmem:[#allocation9 + $0xc0] sm:$0xf]
    %v1103 = vld [vmem:[#allocation9 + $0xc4] sm:$0xf]
    %v1104 = vld [vmem:[#allocation9 + $0xc8] sm:$0xf]
    %v1105 = vld [vmem:[#allocation9 + $0xcc] sm:$0xf]
    %v1106 = vld [vmem:[#allocation9 + $0xd0] sm:$0xf]
    %v1107 = vld [vmem:[#allocation9 + $0xd4] sm:$0xf]
    %v1108 = vld [vmem:[#allocation9 + $0xd8] sm:$0xf]
    %v1109 = vld [vmem:[#allocation9 + $0xdc] sm:$0xf]
    %v1110 = vld [vmem:[#allocation9 + $0xe0] sm:$0xf]
    %v1111 = vld [vmem:[#allocation9 + $0xe4] sm:$0xf]
    %v1112 = vld [vmem:[#allocation9 + $0xe8] sm:$0xf]
    %v1113 = vld [vmem:[#allocation9 + $0xec] sm:$0xf]
    %v1114 = vld [vmem:[#allocation9 + $0xf0] sm:$0xf]
    %v1115 = vld [vmem:[#allocation9 + $0xf4] sm:$0xf]
    %v1116 = vld [vmem:[#allocation9 + $0xf8] sm:$0xf]
    %v1117 = vld [vmem:[#allocation9 + $0xfc] sm:$0xf]
    %v1182 = vunpack.c.l.b16 %v1054
    %v1183 = vunpack.c.l.b16 %v1055
    %v1184 = vunpack.c.l.b16 %v1056
    %v1185 = vunpack.c.l.b16 %v1057
    %v1186 = vunpack.c.l.b16 %v1058
    %v1187 = vunpack.c.l.b16 %v1059
    %v1188 = vunpack.c.l.b16 %v1060
    %v1189 = vunpack.c.l.b16 %v1061
    %v1190 = vunpack.c.l.b16 %v1062
    %v1191 = vunpack.c.l.b16 %v1063
    %v1192 = vunpack.c.l.b16 %v1064
    %v1193 = vunpack.c.l.b16 %v1065
    %v1194 = vunpack.c.l.b16 %v1066
    %v1195 = vunpack.c.l.b16 %v1067
    %v1196 = vunpack.c.l.b16 %v1068
    %v1197 = vunpack.c.l.b16 %v1069
    %v1198 = vunpack.c.l.b16 %v1070
    %v1199 = vunpack.c.l.b16 %v1071
    %v1200 = vunpack.c.l.b16 %v1072
    %v1201 = vunpack.c.l.b16 %v1073
    %v1202 = vunpack.c.l.b16 %v1074
    %v1203 = vunpack.c.l.b16 %v1075
    %v1204 = vunpack.c.l.b16 %v1076
    %v1205 = vunpack.c.l.b16 %v1077
    %v1206 = vunpack.c.l.b16 %v1078
    %v1207 = vunpack.c.l.b16 %v1079
    %v1208 = vunpack.c.l.b16 %v1080
    %v1209 = vunpack.c.l.b16 %v1081
    %v1210 = vunpack.c.l.b16 %v1082
    %v1211 = vunpack.c.l.b16 %v1083
    %v1212 = vunpack.c.l.b16 %v1084
    %v1213 = vunpack.c.l.b16 %v1085
    %v1214 = vunpack.c.l.b16 %v1086
    %v1215 = vunpack.c.l.b16 %v1087
    %v1216 = vunpack.c.l.b16 %v1088
    %v1217 = vunpack.c.l.b16 %v1089
    %v1218 = vunpack.c.l.b16 %v1090
    %v1219 = vunpack.c.l.b16 %v1091
    %v1220 = vunpack.c.l.b16 %v1092
    %v1221 = vunpack.c.l.b16 %v1093
    %v1222 = vunpack.c.l.b16 %v1094
    %v1223 = vunpack.c.l.b16 %v1095
    %v1224 = vunpack.c.l.b16 %v1096
    %v1225 = vunpack.c.l.b16 %v1097
    %v1226 = vunpack.c.l.b16 %v1098
    %v1227 = vunpack.c.l.b16 %v1099
    %v1228 = vunpack.c.l.b16 %v1100
    %v1229 = vunpack.c.l.b16 %v1101
    %v1230 = vunpack.c.l.b16 %v1102
    %v1231 = vunpack.c.l.b16 %v1103
    %v1232 = vunpack.c.l.b16 %v1104
    %v1233 = vunpack.c.l.b16 %v1105
    %v1234 = vunpack.c.l.b16 %v1106
    %v1235 = vunpack.c.l.b16 %v1107
    %v1236 = vunpack.c.l.b16 %v1108
    %v1237 = vunpack.c.l.b16 %v1109
    %v1238 = vunpack.c.l.b16 %v1110
    %v1239 = vunpack.c.l.b16 %v1111
    %v1240 = vunpack.c.l.b16 %v1112
    %v1241 = vunpack.c.l.b16 %v1113
    %v1242 = vunpack.c.l.b16 %v1114
    %v1243 = vunpack.c.l.b16 %v1115
    %v1244 = vunpack.c.l.b16 %v1116
    %v1245 = vunpack.c.l.b16 %v1117
    %v1246 = vpack.c.b16 %v1183, %v1182
    %v1247 = vpack.c.b16 %v1185, %v1184
    %v1248 = vpack.c.b16 %v1187, %v1186
    %v1249 = vpack.c.b16 %v1189, %v1188
    %v1250 = vpack.c.b16 %v1191, %v1190
    %v1251 = vpack.c.b16 %v1193, %v1192
    %v1252 = vpack.c.b16 %v1195, %v1194
    %v1253 = vpack.c.b16 %v1197, %v1196
    %v1254 = vpack.c.b16 %v1199, %v1198
    %v1255 = vpack.c.b16 %v1201, %v1200
    %v1256 = vpack.c.b16 %v1203, %v1202
    %v1257 = vpack.c.b16 %v1205, %v1204
    %v1258 = vpack.c.b16 %v1207, %v1206
    %v1259 = vpack.c.b16 %v1209, %v1208
    %v1260 = vpack.c.b16 %v1211, %v1210
    %v1261 = vpack.c.b16 %v1213, %v1212
    %v1262 = vpack.c.b16 %v1215, %v1214
    %v1263 = vpack.c.b16 %v1217, %v1216
    %v1264 = vpack.c.b16 %v1219, %v1218
    %v1265 = vpack.c.b16 %v1221, %v1220
    %v1266 = vpack.c.b16 %v1223, %v1222
    %v1267 = vpack.c.b16 %v1225, %v1224
    %v1268 = vpack.c.b16 %v1227, %v1226
    %v1269 = vpack.c.b16 %v1229, %v1228
    %v1270 = vpack.c.b16 %v1231, %v1230
    %v1271 = vpack.c.b16 %v1233, %v1232
    %v1272 = vpack.c.b16 %v1235, %v1234
    %v1273 = vpack.c.b16 %v1237, %v1236
    %v1274 = vpack.c.b16 %v1239, %v1238
    %v1275 = vpack.c.b16 %v1241, %v1240
    %v1276 = vpack.c.b16 %v1243, %v1242
    %v1277 = vpack.c.b16 %v1245, %v1244
    %1310 = vmatprep.subr.bf16.mxu0 0
    %1311 = vmatpush1.bf16.msra.mxu0 %v1246
    %1312 = vmatprep.subr.bf16.mxu0 0
    %1313 = vmatpush1.bf16.msra.mxu0 %v1247
    %1314 = vmatprep.subr.bf16.mxu0 0
    %1315 = vmatpush1.bf16.msra.mxu0 %v1248
    %1316 = vmatprep.subr.bf16.mxu0 0
    %1317 = vmatpush1.bf16.msra.mxu0 %v1249
    %1318 = vmatprep.subr.bf16.mxu0 0
    %1319 = vmatpush1.bf16.msra.mxu0 %v1250
    %1320 = vmatprep.subr.bf16.mxu0 0
    %1321 = vmatpush1.bf16.msra.mxu0 %v1251
    %1322 = vmatprep.subr.bf16.mxu0 0
    %1323 = vmatpush1.bf16.msra.mxu0 %v1252
    %1324 = vmatprep.subr.bf16.mxu0 0
    %1325 = vmatpush1.bf16.msra.mxu0 %v1253
    %1326 = vmatprep.subr.bf16.mxu0 0
    %1327 = vmatpush1.bf16.msra.mxu0 %v1254
    %1328 = vmatprep.subr.bf16.mxu0 0
    %1329 = vmatpush1.bf16.msra.mxu0 %v1255
    %1330 = vmatprep.subr.bf16.mxu0 0
    %1331 = vmatpush1.bf16.msra.mxu0 %v1256
    %1332 = vmatprep.subr.bf16.mxu0 0
    %1333 = vmatpush1.bf16.msra.mxu0 %v1257
    %1334 = vmatprep.subr.bf16.mxu0 0
    %1335 = vmatpush1.bf16.msra.mxu0 %v1258
    %1336 = vmatprep.subr.bf16.mxu0 0
    %1337 = vmatpush1.bf16.msra.mxu0 %v1259
    %1338 = vmatprep.subr.bf16.mxu0 0
    %1339 = vmatpush1.bf16.msra.mxu0 %v1260
    %1340 = vmatprep.subr.bf16.mxu0 0
    %1341 = vmatpush1.bf16.msra.mxu0 %v1261
    %1342 = vmatprep.mubr.bf16.mxu0 %v1039
    %1343 = vmatmul.mubr.bf16.gmra.mrb[0].mxu0 %v1038
    %v1344 = vpop.f32.mrb[0].mxu0
    %v1345 = vadd.f32 0.0, %v1344
    %v1346 = vpop.f32.mrb[0].mxu0
    %v1347 = vpop.f32.mrb[0].mxu0
    %v1348 = vadd.f32 0.0, %v1347
    %v1349 = vpop.f32.mrb[0].mxu0
    %1350 = vmatprep.mubr.bf16.mxu0 %v1043
    %1351 = vmatmul.mubr.bf16.gmra.mrb[0].mxu0 %v1042
    %v1352 = vpop.f32.mrb[0].mxu0
    %v1353 = vadd.f32 0.0, %v1352
    %v1354 = vpop.f32.mrb[0].mxu0
    %v1355 = vpop.f32.mrb[0].mxu0
    %v1356 = vadd.f32 0.0, %v1355
    %v1357 = vpop.f32.mrb[0].mxu0
    %1358 = vmatprep.mubr.bf16.mxu0 %v1047
    %1359 = vmatmul.mubr.bf16.gmra.mrb[0].mxu0 %v1046
    %v1360 = vpop.f32.mrb[0].mxu0
    %v1361 = vadd.f32 0.0, %v1360
    %v1362 = vpop.f32.mrb[0].mxu0
    %v1363 = vpop.f32.mrb[0].mxu0
    %v1364 = vadd.f32 0.0, %v1363
    %v1365 = vpop.f32.mrb[0].mxu0
    %1366 = vmatprep.mubr.bf16.mxu0 %v1051
    %1367 = vmatmul.mubr.bf16.gmra.mrb[0].mxu0 %v1050
    %v1368 = vpop.f32.mrb[0].mxu0
    %v1369 = vadd.f32 0.0, %v1368
    %v1370 = vpop.f32.mrb[0].mxu0
    %v1371 = vpop.f32.mrb[0].mxu0
    %v1372 = vadd.f32 0.0, %v1371
    %v1373 = vpop.f32.mrb[0].mxu0
    %1374 = vdwg.mxu0
    %1375 = vmatprep.subr.bf16.mxu0 0
    %1376 = vmatpush1.bf16.msra.mxu0 %v1262
    %1377 = vmatprep.subr.bf16.mxu0 0
    %1378 = vmatpush1.bf16.msra.mxu0 %v1263
    %1379 = vmatprep.subr.bf16.mxu0 0
    %1380 = vmatpush1.bf16.msra.mxu0 %v1264
    %1381 = vmatprep.subr.bf16.mxu0 0
    %1382 = vmatpush1.bf16.msra.mxu0 %v1265
    %1383 = vmatprep.subr.bf16.mxu0 0
    %1384 = vmatpush1.bf16.msra.mxu0 %v1266
    %1385 = vmatprep.subr.bf16.mxu0 0
    %1386 = vmatpush1.bf16.msra.mxu0 %v1267
    %1387 = vmatprep.subr.bf16.mxu0 0
    %1388 = vmatpush1.bf16.msra.mxu0 %v1268
    %1389 = vmatprep.subr.bf16.mxu0 0
    %1390 = vmatpush1.bf16.msra.mxu0 %v1269
    %1391 = vmatprep.subr.bf16.mxu0 0
    %1392 = vmatpush1.bf16.msra.mxu0 %v1270
    %1393 = vmatprep.subr.bf16.mxu0 0
    %1394 = vmatpush1.bf16.msra.mxu0 %v1271
    %1395 = vmatprep.subr.bf16.mxu0 0
    %1396 = vmatpush1.bf16.msra.mxu0 %v1272
    %1397 = vmatprep.subr.bf16.mxu0 0
    %1398 = vmatpush1.bf16.msra.mxu0 %v1273
    %1399 = vmatprep.subr.bf16.mxu0 0
    %1400 = vmatpush1.bf16.msra.mxu0 %v1274
    %1401 = vmatprep.subr.bf16.mxu0 0
    %1402 = vmatpush1.bf16.msra.mxu0 %v1275
    %1403 = vmatprep.subr.bf16.mxu0 0
    %1404 = vmatpush1.bf16.msra.mxu0 %v1276
    %1405 = vmatprep.subr.bf16.mxu0 0
    %1406 = vmatpush1.bf16.msra.mxu0 %v1277
    %1407 = vmatprep.mubr.bf16.mxu0 %v1041
    %1408 = vmatmul.mubr.bf16.gmra.mrb[0].mxu0 %v1040
    %v1409 = vpop.f32.mrb[0].mxu0
    %v1410 = vadd.f32 %v1345, %v1409
    %v1411 = vpop.f32.mrb[0].mxu0
    %v1412 = vpop.f32.mrb[0].mxu0
    %v1413 = vadd.f32 %v1348, %v1412
    %v1414 = vpop.f32.mrb[0].mxu0
    %1415 = vmatprep.mubr.bf16.mxu0 %v1045
    %1416 = vmatmul.mubr.bf16.gmra.mrb[0].mxu0 %v1044
    %v1417 = vpop.f32.mrb[0].mxu0
    %v1418 = vadd.f32 %v1353, %v1417
    %v1419 = vpop.f32.mrb[0].mxu0
    %v1420 = vpop.f32.mrb[0].mxu0
    %v1421 = vadd.f32 %v1356, %v1420
    %v1422 = vpop.f32.mrb[0].mxu0
    %1423 = vmatprep.mubr.bf16.mxu0 %v1049
    %1424 = vmatmul.mubr.bf16.gmra.mrb[0].mxu0 %v1048
    %v1425 = vpop.f32.mrb[0].mxu0
    %v1426 = vadd.f32 %v1361, %v1425
    %v1427 = vpop.f32.mrb[0].mxu0
    %v1428 = vpop.f32.mrb[0].mxu0
    %v1429 = vadd.f32 %v1364, %v1428
    %v1430 = vpop.f32.mrb[0].mxu0
    %1431 = vmatprep.mubr.bf16.mxu0 %v1053
    %1432 = vmatmul.mubr.bf16.gmra.mrb[0].mxu0 %v1052
    %v1433 = vpop.f32.mrb[0].mxu0
    %v1434 = vadd.f32 %v1369, %v1433
    %v1435 = vpop.f32.mrb[0].mxu0
    %v1436 = vpop.f32.mrb[0].mxu0
    %v1437 = vadd.f32 %v1372, %v1436
    %v1438 = vpop.f32.mrb[0].mxu0
    %1439 = vdwg.mxu0
    %p1440 = scmp.eq.s32.totalorder 0, 0
    // Predicated region
    $region34: #{tpu_custom_call.1} parent=1 // pred_check
      %p1441 = pneg %p1440
    $region35: #{tpu_custom_call.1} parent=1 // pred_check_branch
      %1443 = sbr.rel (%p1441) target = $region37
    $region36: #{tpu_custom_call.1} parent=1 // pred_region
      %1444 = vst [vmem:[#allocation2] sm:$0xff] %v1410
      %1445 = vst [vmem:[#allocation2 + $0x8] sm:$0xff] %v1413
      %1446 = vst [vmem:[#allocation2 + $0x10] sm:$0xff] %v1418
      %1447 = vst [vmem:[#allocation2 + $0x18] sm:$0xff] %v1421
      %1448 = vst [vmem:[#allocation2 + $0x20] sm:$0xff] %v1426
      %1449 = vst [vmem:[#allocation2 + $0x28] sm:$0xff] %v1429
      %1450 = vst [vmem:[#allocation2 + $0x30] sm:$0xff] %v1434
      %1451 = vst [vmem:[#allocation2 + $0x38] sm:$0xff] %v1437
    $region37: #{tpu_custom_call.1} parent=1 // pred_fallthru
      _
    %p1452 = scmp.gt.s32.totalorder 0, 0
    // Predicated region
    $region38: #{tpu_custom_call.1} parent=1 // pred_check
      %p1453 = pneg %p1452
    $region39: #{tpu_custom_call.1} parent=1 // pred_check_branch
      %1455 = sbr.rel (%p1453) target = $region41
    $region40: #{tpu_custom_call.1} parent=1 // pred_region
      %v1456 = vld [vmem:[#allocation2] sm:$0xff]
      %v1457 = vld [vmem:[#allocation2 + $0x8] sm:$0xff]
      %v1458 = vld [vmem:[#allocation2 + $0x10] sm:$0xff]
      %v1459 = vld [vmem:[#allocation2 + $0x18] sm:$0xff]
      %v1460 = vld [vmem:[#allocation2 + $0x20] sm:$0xff]
      %v1461 = vld [vmem:[#allocation2 + $0x28] sm:$0xff]
      %v1462 = vld [vmem:[#allocation2 + $0x30] sm:$0xff]
      %v1463 = vld [vmem:[#allocation2 + $0x38] sm:$0xff]
      %v1464 = vadd.f32 %v1456, %v1410
      %v1465 = vadd.f32 %v1457, %v1413
      %v1466 = vadd.f32 %v1458, %v1418
      %v1467 = vadd.f32 %v1459, %v1421
      %v1468 = vadd.f32 %v1460, %v1426
      %v1469 = vadd.f32 %v1461, %v1429
      %v1470 = vadd.f32 %v1462, %v1434
      %v1471 = vadd.f32 %v1463, %v1437
      %1472 = vst [vmem:[#allocation2] sm:$0xff] %v1464
      %1473 = vst [vmem:[#allocation2 + $0x8] sm:$0xff] %v1465
      %1474 = vst [vmem:[#allocation2 + $0x10] sm:$0xff] %v1466
      %1475 = vst [vmem:[#allocation2 + $0x18] sm:$0xff] %v1467
      %1476 = vst [vmem:[#allocation2 + $0x20] sm:$0xff] %v1468
      %1477 = vst [vmem:[#allocation2 + $0x28] sm:$0xff] %v1469
      %1478 = vst [vmem:[#allocation2 + $0x30] sm:$0xff] %v1470
      %1479 = vst [vmem:[#allocation2 + $0x38] sm:$0xff] %v1471
    $region41: #{tpu_custom_call.1} parent=1 // pred_fallthru
      _
    // Predicated region
    $region42: #{tpu_custom_call.1} parent=1 // pred_check
      %p1480 = pneg %p1440
    $region43: #{tpu_custom_call.1} parent=1 // pred_check_branch
      %1482 = sbr.rel (%p1480) target = $region45
    $region44: #{tpu_custom_call.1} parent=1 // pred_region
      %v1483 = vld [vmem:[#allocation2] sm:$0xff]
      %v1484 = vld [vmem:[#allocation2 + $0x8] sm:$0xff]
      %v1485 = vld [vmem:[#allocation2 + $0x10] sm:$0xff]
      %v1486 = vld [vmem:[#allocation2 + $0x18] sm:$0xff]
      %v1487 = vld [vmem:[#allocation2 + $0x20] sm:$0xff]
      %v1488 = vld [vmem:[#allocation2 + $0x28] sm:$0xff]
      %v1489 = vld [vmem:[#allocation2 + $0x30] sm:$0xff]
      %v1490 = vld [vmem:[#allocation2 + $0x38] sm:$0xff]
      %v1491 = vpack.c.bf16 %v1484, %v1483
      %v1492 = vpack.c.bf16 %v1486, %v1485
      %v1493 = vpack.c.bf16 %v1488, %v1487
      %v1494 = vpack.c.bf16 %v1490, %v1489
      %v1499 = vunpack.c.l.b16 %v1491
      %v1500 = vunpack.c.h.b16 %v1491
      %v1501 = vunpack.c.l.b16 %v1492
      %v1502 = vunpack.c.h.b16 %v1492
      %v1503 = vunpack.c.l.b16 %v1493
      %v1504 = vunpack.c.h.b16 %v1493
      %v1505 = vunpack.c.l.b16 %v1494
      %v1506 = vunpack.c.h.b16 %v1494
      %v1507 = vpack.c.b16 %v1499, %v1499
      %v1508 = vpack.c.b16 %v1500, %v1500
      %v1509 = vpack.c.b16 %v1501, %v1501
      %v1510 = vpack.c.b16 %v1502, %v1502
      %v1511 = vpack.c.b16 %v1503, %v1503
      %v1512 = vpack.c.b16 %v1504, %v1504
      %v1513 = vpack.c.b16 %v1505, %v1505
      %v1514 = vpack.c.b16 %v1506, %v1506
      %1523 = vst [vmem:[#allocation11] sm:$0xf] %v1507
      %1524 = vst [vmem:[#allocation11 + $0x4] sm:$0xf] %v1508
      %1525 = vst [vmem:[#allocation11 + $0x8] sm:$0xf] %v1509
      %1526 = vst [vmem:[#allocation11 + $0xc] sm:$0xf] %v1510
      %1527 = vst [vmem:[#allocation11 + $0x10] sm:$0xf] %v1511
      %1528 = vst [vmem:[#allocation11 + $0x14] sm:$0xf] %v1512
      %1529 = vst [vmem:[#allocation11 + $0x18] sm:$0xf] %v1513
      %1530 = vst [vmem:[#allocation11 + $0x1c] sm:$0xf] %v1514
    $region45: #{tpu_custom_call.1} parent=1 // pred_fallthru
      _
    // Predicated region
    $region46: #{tpu_custom_call.1} parent=1 // pred_check
      _
    $region47: #{tpu_custom_call.1} parent=1 // pred_check_branch
      %1532 = sbr.rel (0) target = $region49
    $region48: #{tpu_custom_call.1} parent=1 // pred_region
      %s1534 = ssub.s32 512, 512
      %1535 = vsyncadd [#allocation5], %s1534
      %s1536 = sshll.u32 [#allocation11], 4
      %s1537 = int_to_ptr.vmem [resolvable:$true] %s1536
      %1542 = dma.vmem_to_hbm [thread:$0]  %s1537, 512, %s4, [#allocation5], 64, 64, 4
    $region49: #{tpu_custom_call.1} parent=1 // pred_fallthru
      _
    // Predicated region
    $region50: #{tpu_custom_call.1} parent=1 // pred_check
      _
    $region51: #{tpu_custom_call.1} parent=1 // pred_check_branch
      %1544 = sbr.rel (0) target = $region53
    $region52: #{tpu_custom_call.1} parent=1 // pred_region
      %1545 = dma.done [#allocation5], 512
    $region53: #{tpu_custom_call.1} parent=1 // pred_fallthru
      _
    %1546 = vsyncpa [#allocation4], 1
    %1547 = vsyncpa [#allocation7], 1
    %1548 = vsyncpa [#allocation10], 1
    %1549 = vsyncpa [#allocation5], 1

// kernel: tpu_custom_call.1
$region0: #{tpu_custom_call.1}
  #allocation0 [shape = 'u32[]', space=smem, size = 0x4, offset = 0x4, fixed_abs, tag = 'smem constant byte address 0x4 - core index']
  #allocation1 [shape = 'u32[144,128]{1,0:T(1,128)}', space=vmem, size = 0x12000, scoped, tag = 'internal scratch']
  #allocation2 [shape = 'f32[64,128]{1,0:T(8,128)}', space=vmem, size = 0x8000, scoped, tag = 'scratch operand']
  %s0 = inlined_call_operand.hbm [shape: bf16[64,128], index: 0, kind: input, shape index: {}]
  %s1 = inlined_call_operand.hbm [shape: bf16[128,512], index: 1, kind: input, shape index: {}]
  %s2 = inlined_call_operand.hbm [shape: bf16[128,512], index: 2, kind: input, shape index: {}]
  %s3 = inlined_call_operand.hbm [shape: bf16[512,128], index: 3, kind: input, shape index: {}]
  %s4 = inlined_call_operand.hbm [shape: bf16[64,128], index: 4, kind: output, shape index: {}]
  %s5 = sld [smem:[#allocation0]]
  $region54: #{tpu_custom_call.1} parent=0
    _
  %s7 = ssub.s32 1, %s5
  %s8 = scalar_select 0, %s7, %s5
  $region1: #{tpu_custom_call.1} parent=0
    #allocation3 [shape = 'u8[16384]{0}', space=vmem, size = 0x4000, scoped, tag = 'input window, operand 0, single buffered']
    #allocation4 [shape = 's32[1]{0}', space=sflag, size = 0x4, scoped, tag = 'scoped memory for tpu_custom_call.1']
    #allocation5 [shape = 's32[1]{0}', space=sflag, size = 0x4, scoped, tag = 'scoped memory for tpu_custom_call.1']
    #allocation6 [shape = 'u8[131072]{0}', space=vmem, size = 0x20000, scoped, tag = 'input window, operand 1, single buffered']
    #allocation7 [shape = 's32[1]{0}', space=sflag, size = 0x4, scoped, tag = 'scoped memory for tpu_custom_call.1']
    #allocation8 [shape = 'u8[131072]{0}', space=vmem, size = 0x20000, scoped, tag = 'input window, operand 2, single buffered']
    #allocation9 [shape = 'u8[131072]{0}', space=vmem, size = 0x20000, scoped, tag = 'input window, operand 3, single buffered']
    #allocation10 [shape = 's32[1]{0}', space=sflag, size = 0x4, scoped, tag = 'scoped memory for tpu_custom_call.1']
    #allocation11 [shape = 'u8[16384]{0}', space=vmem, size = 0x4000, scoped, tag = 'output window, operand 0, single buffered']
    %9 = vsyncpa [#allocation4], 0
    %10 = vsyncpa [#allocation7], 0
    %11 = vsyncpa [#allocation10], 0
    %12 = vsyncpa [#allocation5], 0
    // Predicated region
    $region2: #{tpu_custom_call.1} parent=1 // pred_check
      _
    $region3: #{tpu_custom_call.1} parent=1 // pred_check_branch
      %14 = sbr.rel (0) target = $region5
    $region4: #{tpu_custom_call.1} parent=1 // pred_region
      %s16 = ssub.s32 512, 512
      %17 = vsyncadd [#allocation4], %s16
      %s18 = sshll.u32 [#allocation3], 4
      %s19 = int_to_ptr.vmem [resolvable:$true] %s18
      %24 = dma.hbm_to_vmem [thread:$0]  %s0, 512, %s19, [#allocation4], 64, 64, 4
    $region5: #{tpu_custom_call.1} parent=1 // pred_fallthru
      _
    // Predicated region
    $region6: #{tpu_custom_call.1} parent=1 // pred_check
      _
    $region7: #{tpu_custom_call.1} parent=1 // pred_check_branch
      %26 = sbr.rel (0) target = $region9
    $region8: #{tpu_custom_call.1} parent=1 // pred_region
      %s28 = ssub.s32 4096, 4096
      %29 = vsyncadd [#allocation7], %s28
      %s30 = sshll.u32 [#allocation6], 4
      %s31 = int_to_ptr.vmem [resolvable:$true] %s30
      %36 = dma.hbm_to_vmem [thread:$0]  %s1, 4096, %s31, [#allocation7], 256, 256, 16
    $region9: #{tpu_custom_call.1} parent=1 // pred_fallthru
      _
    // Predicated region
    $region10: #{tpu_custom_call.1} parent=1 // pred_check
      _
    $region11: #{tpu_custom_call.1} parent=1 // pred_check_branch
      %38 = sbr.rel (0) target = $region13
    $region12: #{tpu_custom_call.1} parent=1 // pred_region
      %s40 = ssub.s32 4096, 4096
      %41 = vsyncadd [#allocation7], %s40
      %s42 = sshll.u32 [#allocation8], 4
      %s43 = int_to_ptr.vmem [resolvable:$true] %s42
      %48 = dma.hbm_to_vmem [thread:$0]  %s2, 4096, %s43, [#allocation7], 256, 256, 16
    $region13: #{tpu_custom_call.1} parent=1 // pred_fallthru
      _
    // Predicated region
    $region14: #{tpu_custom_call.1} parent=1 // pred_check
      _
    $region15: #{tpu_custom_call.1} parent=1 // pred_check_branch
      %50 = sbr.rel (0) target = $region17
    $region16: #{tpu_custom_call.1} parent=1 // pred_region
      %s52 = ssub.s32 4096, 4096
      %53 = vsyncadd [#allocation10], %s52
      %s54 = sshll.u32 [#allocation9], 4
      %s55 = int_to_ptr.vmem [resolvable:$true] %s54
      %60 = dma.hbm_to_vmem [thread:$0]  %s3, 4096, %s55, [#allocation10], 64, 64, 4
    $region17: #{tpu_custom_call.1} parent=1 // pred_fallthru
      _
    // Predicated region
    $region18: #{tpu_custom_call.1} parent=1 // pred_check
      _
    $region19: #{tpu_custom_call.1} parent=1 // pred_check_branch
      %62 = sbr.rel (0) target = $region21
    $region20: #{tpu_custom_call.1} parent=1 // pred_region
      %63 = dma.done [#allocation4], 512
    $region21: #{tpu_custom_call.1} parent=1 // pred_fallthru
      _
    // Predicated region
    $region22: #{tpu_custom_call.1} parent=1 // pred_check
      _
    $region23: #{tpu_custom_call.1} parent=1 // pred_check_branch
      %65 = sbr.rel (0) target = $region25
    $region24: #{tpu_custom_call.1} parent=1 // pred_region
      %66 = dma.done [#allocation7], 4096
    $region25: #{tpu_custom_call.1} parent=1 // pred_fallthru
      _
    // Predicated region
    $region26: #{tpu_custom_call.1} parent=1 // pred_check
      _
    $region27: #{tpu_custom_call.1} parent=1 // pred_check_branch
      %68 = sbr.rel (0) target = $region29
    $region28: #{tpu_custom_call.1} parent=1 // pred_region
      %69 = dma.done [#allocation7], 4096
    $region29: #{tpu_custom_call.1} parent=1 // pred_fallthru
      _
    // Predicated region
    $region30: #{tpu_custom_call.1} parent=1 // pred_check
      _
    $region31: #{tpu_custom_call.1} parent=1 // pred_check_branch
      %71 = sbr.rel (0) target = $region33
    $region32: #{tpu_custom_call.1} parent=1 // pred_region
      %72 = dma.done [#allocation10], 4096
    $region33: #{tpu_custom_call.1} parent=1 // pred_fallthru
      _
    %v74 = vld [vmem:[#allocation3] sm:$0xf]
    %v75 = vld [vmem:[#allocation3 + $0x4] sm:$0xf]
    %v76 = vld [vmem:[#allocation3 + $0x8] sm:$0xf]
    %v77 = vld [vmem:[#allocation3 + $0xc] sm:$0xf]
    %v78 = vld [vmem:[#allocation3 + $0x10] sm:$0xf]
    %v79 = vld [vmem:[#allocation3 + $0x14] sm:$0xf]
    %v80 = vld [vmem:[#allocation3 + $0x18] sm:$0xf]
    %v81 = vld [vmem:[#allocation3 + $0x1c] sm:$0xf]
    %v82 = vld [vmem:[#allocation6] sm:$0xff]
    %v83 = vld [vmem:[#allocation6 + $0x8] sm:$0xff]
    %v84 = vld [vmem:[#allocation6 + $0x10] sm:$0xff]
    %v85 = vld [vmem:[#allocation6 + $0x18] sm:$0xff]
    %v86 = vld [vmem:[#allocation6 + $0x20] sm:$0xff]
    %v87 = vld [vmem:[#allocation6 + $0x28] sm:$0xff]
    %v88 = vld [vmem:[#allocation6 + $0x30] sm:$0xff]
    %v89 = vld [vmem:[#allocation6 + $0x38] sm:$0xff]
    %v90 = vld [vmem:[#allocation6 + $0x40] sm:$0xff]
    %v91 = vld [vmem:[#allocation6 + $0x48] sm:$0xff]
    %v92 = vld [vmem:[#allocation6 + $0x50] sm:$0xff]
    %v93 = vld [vmem:[#allocation6 + $0x58] sm:$0xff]
    %v94 = vld [vmem:[#allocation6 + $0x60] sm:$0xff]
    %v95 = vld [vmem:[#allocation6 + $0x68] sm:$0xff]
    %v96 = vld [vmem:[#allocation6 + $0x70] sm:$0xff]
    %v97 = vld [vmem:[#allocation6 + $0x78] sm:$0xff]
    %v98 = vld [vmem:[#allocation6 + $0x80] sm:$0xff]
    %v99 = vld [vmem:[#allocation6 + $0x88] sm:$0xff]
    %v100 = vld [vmem:[#allocation6 + $0x90] sm:$0xff]
    %v101 = vld [vmem:[#allocation6 + $0x98] sm:$0xff]
    %v102 = vld [vmem:[#allocation6 + $0xa0] sm:$0xff]
    %v103 = vld [vmem:[#allocation6 + $0xa8] sm:$0xff]
    %v104 = vld [vmem:[#allocation6 + $0xb0] sm:$0xff]
    %v105 = vld [vmem:[#allocation6 + $0xb8] sm:$0xff]
    %v106 = vld [vmem:[#allocation6 + $0xc0] sm:$0xff]
    %v107 = vld [vmem:[#allocation6 + $0xc8] sm:$0xff]
    %v108 = vld [vmem:[#allocation6 + $0xd0] sm:$0xff]
    %v109 = vld [vmem:[#allocation6 + $0xd8] sm:$0xff]
    %v110 = vld [vmem:[#allocation6 + $0xe0] sm:$0xff]
    %v111 = vld [vmem:[#allocation6 + $0xe8] sm:$0xff]
    %v112 = vld [vmem:[#allocation6 + $0xf0] sm:$0xff]
    %v113 = vld [vmem:[#allocation6 + $0xf8] sm:$0xff]
    %v122 = vunpack.c.l.b16 %v74
    %v123 = vunpack.c.l.b16 %v75
    %v124 = vunpack.c.l.b16 %v76
    %v125 = vunpack.c.l.b16 %v77
    %v126 = vunpack.c.l.b16 %v78
    %v127 = vunpack.c.l.b16 %v79
    %v128 = vunpack.c.l.b16 %v80
    %v129 = vunpack.c.l.b16 %v81
    %v130 = vpack.c.b16 %v123, %v122
    %v131 = vpack.c.b16 %v125, %v124
    %v132 = vpack.c.b16 %v127, %v126
    %v133 = vpack.c.b16 %v129, %v128
    %v170 = vunpack.c.l.b16 %v82
    %v171 = vunpack.c.h.b16 %v82
    %v172 = vunpack.c.l.b16 %v83
    %v173 = vunpack.c.h.b16 %v83
    %v174 = vunpack.c.l.b16 %v84
    %v175 = vunpack.c.h.b16 %v84
    %v176 = vunpack.c.l.b16 %v85
    %v177 = vunpack.c.h.b16 %v85
    %v178 = vunpack.c.l.b16 %v86
    %v179 = vunpack.c.h.b16 %v86
    %v180 = vunpack.c.l.b16 %v87
    %v181 = vunpack.c.h.b16 %v87
    %v182 = vunpack.c.l.b16 %v88
    %v183 = vunpack.c.h.b16 %v88
    %v184 = vunpack.c.l.b16 %v89
    %v185 = vunpack.c.h.b16 %v89
    %v186 = vunpack.c.l.b16 %v90
    %v187 = vunpack.c.h.b16 %v90
    %v188 = vunpack.c.l.b16 %v91
    %v189 = vunpack.c.h.b16 %v91
    %v190 = vunpack.c.l.b16 %v92
    %v191 = vunpack.c.h.b16 %v92
    %v192 = vunpack.c.l.b16 %v93
    %v193 = vunpack.c.h.b16 %v93
    %v194 = vunpack.c.l.b16 %v94
    %v195 = vunpack.c.h.b16 %v94
    %v196 = vunpack.c.l.b16 %v95
    %v197 = vunpack.c.h.b16 %v95
    %v198 = vunpack.c.l.b16 %v96
    %v199 = vunpack.c.h.b16 %v96
    %v200 = vunpack.c.l.b16 %v97
    %v201 = vunpack.c.h.b16 %v97
    %v202 = vunpack.c.l.b16 %v98
    %v203 = vunpack.c.h.b16 %v98
    %v204 = vunpack.c.l.b16 %v99
    %v205 = vunpack.c.h.b16 %v99
    %v206 = vunpack.c.l.b16 %v100
    %v207 = vunpack.c.h.b16 %v100
    %v208 = vunpack.c.l.b16 %v101
    %v209 = vunpack.c.h.b16 %v101
    %v210 = vunpack.c.l.b16 %v102
    %v211 = vunpack.c.h.b16 %v102
    %v212 = vunpack.c.l.b16 %v103
    %v213 = vunpack.c.h.b16 %v103
    %v214 = vunpack.c.l.b16 %v104
    %v215 = vunpack.c.h.b16 %v104
    %v216 = vunpack.c.l.b16 %v105
    %v217 = vunpack.c.h.b16 %v105
    %v218 = vunpack.c.l.b16 %v106
    %v219 = vunpack.c.h.b16 %v106
    %v220 = vunpack.c.l.b16 %v107
    %v221 = vunpack.c.h.b16 %v107
    %v222 = vunpack.c.l.b16 %v108
    %v223 = vunpack.c.h.b16 %v108
    %v224 = vunpack.c.l.b16 %v109
    %v225 = vunpack.c.h.b16 %v109
    %v226 = vunpack.c.l.b16 %v110
    %v227 = vunpack.c.h.b16 %v110
    %v228 = vunpack.c.l.b16 %v111
    %v229 = vunpack.c.h.b16 %v111
    %v230 = vunpack.c.l.b16 %v112
    %v231 = vunpack.c.h.b16 %v112
    %v232 = vunpack.c.l.b16 %v113
    %v233 = vunpack.c.h.b16 %v113
    %v234 = vpack.c.b16 %v174, %v170
    %v235 = vpack.c.b16 %v175, %v171
    %v236 = vpack.c.b16 %v176, %v172
    %v237 = vpack.c.b16 %v177, %v173
    %v238 = vpack.c.b16 %v182, %v178
    %v239 = vpack.c.b16 %v183, %v179
    %v240 = vpack.c.b16 %v184, %v180
    %v241 = vpack.c.b16 %v185, %v181
    %v242 = vpack.c.b16 %v190, %v186
    %v243 = vpack.c.b16 %v191, %v187
    %v244 = vpack.c.b16 %v192, %v188
    %v245 = vpack.c.b16 %v193, %v189
    %v246 = vpack.c.b16 %v198, %v194
    %v247 = vpack.c.b16 %v199, %v195
    %v248 = vpack.c.b16 %v200, %v196
    %v249 = vpack.c.b16 %v201, %v197
    %v250 = vpack.c.b16 %v206, %v202
    %v251 = vpack.c.b16 %v207, %v203
    %v252 = vpack.c.b16 %v208, %v204
    %v253 = vpack.c.b16 %v209, %v205
    %v254 = vpack.c.b16 %v214, %v210
    %v255 = vpack.c.b16 %v215, %v211
    %v256 = vpack.c.b16 %v216, %v212
    %v257 = vpack.c.b16 %v217, %v213
    %v258 = vpack.c.b16 %v222, %v218
    %v259 = vpack.c.b16 %v223, %v219
    %v260 = vpack.c.b16 %v224, %v220
    %v261 = vpack.c.b16 %v225, %v221
    %v262 = vpack.c.b16 %v230, %v226
    %v263 = vpack.c.b16 %v231, %v227
    %v264 = vpack.c.b16 %v232, %v228
    %v265 = vpack.c.b16 %v233, %v229
    %298 = vmatprep.subr.bf16.mxu0 %v235
    %299 = vmatpush1.bf16.msra.mxu0 %v234
    %300 = vmatprep.subr.bf16.mxu0 %v239
    %301 = vmatpush1.bf16.msra.mxu0 %v238
    %302 = vmatprep.subr.bf16.mxu0 %v243
    %303 = vmatpush1.bf16.msra.mxu0 %v242
    %304 = vmatprep.subr.bf16.mxu0 %v247
    %305 = vmatpush1.bf16.msra.mxu0 %v246
    %306 = vmatprep.subr.bf16.mxu0 %v251
    %307 = vmatpush1.bf16.msra.mxu0 %v250
    %308 = vmatprep.subr.bf16.mxu0 %v255
    %309 = vmatpush1.bf16.msra.mxu0 %v254
    %310 = vmatprep.subr.bf16.mxu0 %v259
    %311 = vmatpush1.bf16.msra.mxu0 %v258
    %312 = vmatprep.subr.bf16.mxu0 %v263
    %313 = vmatpush1.bf16.msra.mxu0 %v262
    %314 = vmatprep.subr.bf16.mxu0 0
    %315 = vmatpush1.bf16.msra.mxu0 0
    %316 = vmatprep.subr.bf16.mxu0 0
    %317 = vmatpush1.bf16.msra.mxu0 0
    %318 = vmatprep.subr.bf16.mxu0 0
    %319 = vmatpush1.bf16.msra.mxu0 0
    %320 = vmatprep.subr.bf16.mxu0 0
    %321 = vmatpush1.bf16.msra.mxu0 0
    %322 = vmatprep.subr.bf16.mxu0 0
    %323 = vmatpush1.bf16.msra.mxu0 0
    %324 = vmatprep.subr.bf16.mxu0 0
    %325 = vmatpush1.bf16.msra.mxu0 0
    %326 = vmatprep.subr.bf16.mxu0 0
    %327 = vmatpush1.bf16.msra.mxu0 0
    %328 = vmatprep.subr.bf16.mxu0 0
    %329 = vmatpush1.bf16.msra.mxu0 0
    %330 = vmatprep.mubr.bf16.mxu0 0
    %331 = vmatmul.mubr.bf16.gmra.mrb[0].mxu0 %v130
    %v332 = vpop.f32.mrb[0].mxu0
    %v333 = vadd.f32 0.0, %v332
    %v334 = vpop.f32.mrb[0].mxu0
    %v335 = vadd.f32 0.0, %v334
    %v336 = vpop.f32.mrb[0].mxu0
    %v337 = vadd.f32 0.0, %v336
    %v338 = vpop.f32.mrb[0].mxu0
    %v339 = vadd.f32 0.0, %v338
    %340 = vmatprep.mubr.bf16.mxu0 0
    %341 = vmatmul.mubr.bf16.gmra.mrb[0].mxu0 %v131
    %v342 = vpop.f32.mrb[0].mxu0
    %v343 = vadd.f32 0.0, %v342
    %v344 = vpop.f32.mrb[0].mxu0
    %v345 = vadd.f32 0.0, %v344
    %v346 = vpop.f32.mrb[0].mxu0
    %v347 = vadd.f32 0.0, %v346
    %v348 = vpop.f32.mrb[0].mxu0
    %v349 = vadd.f32 0.0, %v348
    %350 = vmatprep.mubr.bf16.mxu0 0
    %351 = vmatmul.mubr.bf16.gmra.mrb[0].mxu0 %v132
    %v352 = vpop.f32.mrb[0].mxu0
    %v353 = vadd.f32 0.0, %v352
    %v354 = vpop.f32.mrb[0].mxu0
    %v355 = vadd.f32 0.0, %v354
    %v356 = vpop.f32.mrb[0].mxu0
    %v357 = vadd.f32 0.0, %v356
    %v358 = vpop.f32.mrb[0].mxu0
    %v359 = vadd.f32 0.0, %v358
    %360 = vmatprep.mubr.bf16.mxu0 0
    %361 = vmatmul.mubr.bf16.gmra.mrb[0].mxu0 %v133
    %v362 = vpop.f32.mrb[0].mxu0
    %v363 = vadd.f32 0.0, %v362
    %v364 = vpop.f32.mrb[0].mxu0
    %v365 = vadd.f32 0.0, %v364
    %v366 = vpop.f32.mrb[0].mxu0
    %v367 = vadd.f32 0.0, %v366
    %v368 = vpop.f32.mrb[0].mxu0
    %v369 = vadd.f32 0.0, %v368
    %370 = vdwg.mxu0
    %371 = vmatprep.subr.bf16.mxu0 %v237
    %372 = vmatpush1.bf16.msra.mxu0 %v236
    %373 = vmatprep.subr.bf16.mxu0 %v241
    %374 = vmatpush1.bf16.msra.mxu0 %v240
    %375 = vmatprep.subr.bf16.mxu0 %v245
    %376 = vmatpush1.bf16.msra.mxu0 %v244
    %377 = vmatprep.subr.bf16.mxu0 %v249
    %378 = vmatpush1.bf16.msra.mxu0 %v248
    %379 = vmatprep.subr.bf16.mxu0 %v253
    %380 = vmatpush1.bf16.msra.mxu0 %v252
    %381 = vmatprep.subr.bf16.mxu0 %v257
    %382 = vmatpush1.bf16.msra.mxu0 %v256
    %383 = vmatprep.subr.bf16.mxu0 %v261
    %384 = vmatpush1.bf16.msra.mxu0 %v260
    %385 = vmatprep.subr.bf16.mxu0 %v265
    %386 = vmatpush1.bf16.msra.mxu0 %v264
    %387 = vmatprep.subr.bf16.mxu0 0
    %388 = vmatpush1.bf16.msra.mxu0 0
    %389 = vmatprep.subr.bf16.mxu0 0
    %390 = vmatpush1.bf16.msra.mxu0 0
    %391 = vmatprep.subr.bf16.mxu0 0
    %392 = vmatpush1.bf16.msra.mxu0 0
    %393 = vmatprep.subr.bf16.mxu0 0
    %394 = vmatpush1.bf16.msra.mxu0 0
    %395 = vmatprep.subr.bf16.mxu0 0
    %396 = vmatpush1.bf16.msra.mxu0 0
    %397 = vmatprep.subr.bf16.mxu0 0
    %398 = vmatpush1.bf16.msra.mxu0 0
    %399 = vmatprep.subr.bf16.mxu0 0
    %400 = vmatpush1.bf16.msra.mxu0 0
    %401 = vmatprep.subr.bf16.mxu0 0
    %402 = vmatpush1.bf16.msra.mxu0 0
    %403 = vmatprep.mubr.bf16.mxu0 0
    %404 = vmatmul.mubr.bf16.gmra.mrb[0].mxu0 %v130
    %v405 = vpop.f32.mrb[0].mxu0
    %v406 = vadd.f32 0.0, %v405
    %v407 = vpop.f32.mrb[0].mxu0
    %v408 = vadd.f32 0.0, %v407
    %v409 = vpop.f32.mrb[0].mxu0
    %v410 = vadd.f32 0.0, %v409
    %v411 = vpop.f32.mrb[0].mxu0
    %v412 = vadd.f32 0.0, %v411
    %413 = vmatprep.mubr.bf16.mxu0 0
    %414 = vmatmul.mubr.bf16.gmra.mrb[0].mxu0 %v131
    %v415 = vpop.f32.mrb[0].mxu0
    %v416 = vadd.f32 0.0, %v415
    %v417 = vpop.f32.mrb[0].mxu0
    %v418 = vadd.f32 0.0, %v417
    %v419 = vpop.f32.mrb[0].mxu0
    %v420 = vadd.f32 0.0, %v419
    %v421 = vpop.f32.mrb[0].mxu0
    %v422 = vadd.f32 0.0, %v421
    %423 = vmatprep.mubr.bf16.mxu0 0
    %424 = vmatmul.mubr.bf16.gmra.mrb[0].mxu0 %v132
    %v425 = vpop.f32.mrb[0].mxu0
    %v426 = vadd.f32 0.0, %v425
    %v427 = vpop.f32.mrb[0].mxu0
    %v428 = vadd.f32 0.0, %v427
    %v429 = vpop.f32.mrb[0].mxu0
    %v430 = vadd.f32 0.0, %v429
    %v431 = vpop.f32.mrb[0].mxu0
    %v432 = vadd.f32 0.0, %v431
    %433 = vmatprep.mubr.bf16.mxu0 0
    %434 = vmatmul.mubr.bf16.gmra.mrb[0].mxu0 %v133
    %v435 = vpop.f32.mrb[0].mxu0
    %v436 = vadd.f32 0.0, %v435
    %v437 = vpop.f32.mrb[0].mxu0
    %v438 = vadd.f32 0.0, %v437
    %v439 = vpop.f32.mrb[0].mxu0
    %v440 = vadd.f32 0.0, %v439
    %v441 = vpop.f32.mrb[0].mxu0
    %v442 = vadd.f32 0.0, %v441
    %443 = vdwg.mxu0
    %v444 = vld [vmem:[#allocation8] sm:$0xff]
    %v445 = vld [vmem:[#allocation8 + $0x8] sm:$0xff]
    %v446 = vld [vmem:[#allocation8 + $0x10] sm:$0xff]
    %v447 = vld [vmem:[#allocation8 + $0x18] sm:$0xff]
    %v448 = vld [vmem:[#allocation8 + $0x20] sm:$0xff]
    %v449 = vld [vmem:[#allocation8 + $0x28] sm:$0xff]
    %v450 = vld [vmem:[#allocation8 + $0x30] sm:$0xff]
    %v451 = vld [vmem:[#allocation8 + $0x38] sm:$0xff]
    %v452 = vld [vmem:[#allocation8 + $0x40] sm:$0xff]
    %v453 = vld [vmem:[#allocation8 + $0x48] sm:$0xff]
    %v454 = vld [vmem:[#allocation8 + $0x50] sm:$0xff]
    %v455 = vld [vmem:[#allocation8 + $0x58] sm:$0xff]
    %v456 = vld [vmem:[#allocation8 + $0x60] sm:$0xff]
    %v457 = vld [vmem:[#allocation8 + $0x68] sm:$0xff]
    %v458 = vld [vmem:[#allocation8 + $0x70] sm:$0xff]
    %v459 = vld [vmem:[#allocation8 + $0x78] sm:$0xff]
    %v460 = vld [vmem:[#allocation8 + $0x80] sm:$0xff]
    %v461 = vld [vmem:[#allocation8 + $0x88] sm:$0xff]
    %v462 = vld [vmem:[#allocation8 + $0x90] sm:$0xff]
    %v463 = vld [vmem:[#allocation8 + $0x98] sm:$0xff]
    %v464 = vld [vmem:[#allocation8 + $0xa0] sm:$0xff]
    %v465 = vld [vmem:[#allocation8 + $0xa8] sm:$0xff]
    %v466 = vld [vmem:[#allocation8 + $0xb0] sm:$0xff]
    %v467 = vld [vmem:[#allocation8 + $0xb8] sm:$0xff]
    %v468 = vld [vmem:[#allocation8 + $0xc0] sm:$0xff]
    %v469 = vld [vmem:[#allocation8 + $0xc8] sm:$0xff]
    %v470 = vld [vmem:[#allocation8 + $0xd0] sm:$0xff]
    %v471 = vld [vmem:[#allocation8 + $0xd8] sm:$0xff]
    %v472 = vld [vmem:[#allocation8 + $0xe0] sm:$0xff]
    %v473 = vld [vmem:[#allocation8 + $0xe8] sm:$0xff]
    %v474 = vld [vmem:[#allocation8 + $0xf0] sm:$0xff]
    %v475 = vld [vmem:[#allocation8 + $0xf8] sm:$0xff]
    %v508 = vunpack.c.l.b16 %v444
    %v509 = vunpack.c.h.b16 %v444
    %v510 = vunpack.c.l.b16 %v445
    %v511 = vunpack.c.h.b16 %v445
    %v512 = vunpack.c.l.b16 %v446
    %v513 = vunpack.c.h.b16 %v446
    %v514 = vunpack.c.l.b16 %v447
    %v515 = vunpack.c.h.b16 %v447
    %v516 = vunpack.c.l.b16 %v448
    %v517 = vunpack.c.h.b16 %v448
    %v518 = vunpack.c.l.b16 %v449
    %v519 = vunpack.c.h.b16 %v449
    %v520 = vunpack.c.l.b16 %v450
    %v521 = vunpack.c.h.b16 %v450
    %v522 = vunpack.c.l.b16 %v451
    %v523 = vunpack.c.h.b16 %v451
    %v524 = vunpack.c.l.b16 %v452
    %v525 = vunpack.c.h.b16 %v452
    %v526 = vunpack.c.l.b16 %v453
    %v527 = vunpack.c.h.b16 %v453
    %v528 = vunpack.c.l.b16 %v454
    %v529 = vunpack.c.h.b16 %v454
    %v530 = vunpack.c.l.b16 %v455
    %v531 = vunpack.c.h.b16 %v455
    %v532 = vunpack.c.l.b16 %v456
    %v533 = vunpack.c.h.b16 %v456
    %v534 = vunpack.c.l.b16 %v457
    %v535 = vunpack.c.h.b16 %v457
    %v536 = vunpack.c.l.b16 %v458
    %v537 = vunpack.c.h.b16 %v458
    %v538 = vunpack.c.l.b16 %v459
    %v539 = vunpack.c.h.b16 %v459
    %v540 = vunpack.c.l.b16 %v460
    %v541 = vunpack.c.h.b16 %v460
    %v542 = vunpack.c.l.b16 %v461
    %v543 = vunpack.c.h.b16 %v461
    %v544 = vunpack.c.l.b16 %v462
    %v545 = vunpack.c.h.b16 %v462
    %v546 = vunpack.c.l.b16 %v463
    %v547 = vunpack.c.h.b16 %v463
    %v548 = vunpack.c.l.b16 %v464
    %v549 = vunpack.c.h.b16 %v464
    %v550 = vunpack.c.l.b16 %v465
    %v551 = vunpack.c.h.b16 %v465
    %v552 = vunpack.c.l.b16 %v466
    %v553 = vunpack.c.h.b16 %v466
    %v554 = vunpack.c.l.b16 %v467
    %v555 = vunpack.c.h.b16 %v467
    %v556 = vunpack.c.l.b16 %v468
    %v557 = vunpack.c.h.b16 %v468
    %v558 = vunpack.c.l.b16 %v469
    %v559 = vunpack.c.h.b16 %v469
    %v560 = vunpack.c.l.b16 %v470
    %v561 = vunpack.c.h.b16 %v470
    %v562 = vunpack.c.l.b16 %v471
    %v563 = vunpack.c.h.b16 %v471
    %v564 = vunpack.c.l.b16 %v472
    %v565 = vunpack.c.h.b16 %v472
    %v566 = vunpack.c.l.b16 %v473
    %v567 = vunpack.c.h.b16 %v473
    %v568 = vunpack.c.l.b16 %v474
    %v569 = vunpack.c.h.b16 %v474
    %v570 = vunpack.c.l.b16 %v475
    %v571 = vunpack.c.h.b16 %v475
    %v572 = vpack.c.b16 %v512, %v508
    %v573 = vpack.c.b16 %v513, %v509
    %v574 = vpack.c.b16 %v514, %v510
    %v575 = vpack.c.b16 %v515, %v511
    %v576 = vpack.c.b16 %v520, %v516
    %v577 = vpack.c.b16 %v521, %v517
    %v578 = vpack.c.b16 %v522, %v518
    %v579 = vpack.c.b16 %v523, %v519
    %v580 = vpack.c.b16 %v528, %v524
    %v581 = vpack.c.b16 %v529, %v525
    %v582 = vpack.c.b16 %v530, %v526
    %v583 = vpack.c.b16 %v531, %v527
    %v584 = vpack.c.b16 %v536, %v532
    %v585 = vpack.c.b16 %v537, %v533
    %v586 = vpack.c.b16 %v538, %v534
    %v587 = vpack.c.b16 %v539, %v535
    %v588 = vpack.c.b16 %v544, %v540
    %v589 = vpack.c.b16 %v545, %v541
    %v590 = vpack.c.b16 %v546, %v542
    %v591 = vpack.c.b16 %v547, %v543
    %v592 = vpack.c.b16 %v552, %v548
    %v593 = vpack.c.b16 %v553, %v549
    %v594 = vpack.c.b16 %v554, %v550
    %v595 = vpack.c.b16 %v555, %v551
    %v596 = vpack.c.b16 %v560, %v556
    %v597 = vpack.c.b16 %v561, %v557
    %v598 = vpack.c.b16 %v562, %v558
    %v599 = vpack.c.b16 %v563, %v559
    %v600 = vpack.c.b16 %v568, %v564
    %v601 = vpack.c.b16 %v569, %v565
    %v602 = vpack.c.b16 %v570, %v566
    %v603 = vpack.c.b16 %v571, %v567
    %636 = vmatprep.subr.bf16.mxu0 %v573
    %637 = vmatpush1.bf16.msra.mxu0 %v572
    %638 = vmatprep.subr.bf16.mxu0 %v577
    %639 = vmatpush1.bf16.msra.mxu0 %v576
    %640 = vmatprep.subr.bf16.mxu0 %v581
    %641 = vmatpush1.bf16.msra.mxu0 %v580
    %642 = vmatprep.subr.bf16.mxu0 %v585
    %643 = vmatpush1.bf16.msra.mxu0 %v584
    %644 = vmatprep.subr.bf16.mxu0 %v589
    %645 = vmatpush1.bf16.msra.mxu0 %v588
    %646 = vmatprep.subr.bf16.mxu0 %v593
    %647 = vmatpush1.bf16.msra.mxu0 %v592
    %648 = vmatprep.subr.bf16.mxu0 %v597
    %649 = vmatpush1.bf16.msra.mxu0 %v596
    %650 = vmatprep.subr.bf16.mxu0 %v601
    %651 = vmatpush1.bf16.msra.mxu0 %v600
    %652 = vmatprep.subr.bf16.mxu0 0
    %653 = vmatpush1.bf16.msra.mxu0 0
    %654 = vmatprep.subr.bf16.mxu0 0
    %655 = vmatpush1.bf16.msra.mxu0 0
    %656 = vmatprep.subr.bf16.mxu0 0
    %657 = vmatpush1.bf16.msra.mxu0 0
    %658 = vmatprep.subr.bf16.mxu0 0
    %659 = vmatpush1.bf16.msra.mxu0 0
    %660 = vmatprep.subr.bf16.mxu0 0
    %661 = vmatpush1.bf16.msra.mxu0 0
    %662 = vmatprep.subr.bf16.mxu0 0
    %663 = vmatpush1.bf16.msra.mxu0 0
    %664 = vmatprep.subr.bf16.mxu0 0
    %665 = vmatpush1.bf16.msra.mxu0 0
    %666 = vmatprep.subr.bf16.mxu0 0
    %667 = vmatpush1.bf16.msra.mxu0 0
    %668 = vmatprep.mubr.bf16.mxu0 0
    %669 = vmatmul.mubr.bf16.gmra.mrb[0].mxu0 %v130
    %v670 = vpop.f32.mrb[0].mxu0
    %v671 = vadd.f32 0.0, %v670
    %v672 = vpop.f32.mrb[0].mxu0
    %v673 = vadd.f32 0.0, %v672
    %v674 = vpop.f32.mrb[0].mxu0
    %v675 = vadd.f32 0.0, %v674
    %v676 = vpop.f32.mrb[0].mxu0
    %v677 = vadd.f32 0.0, %v676
    %678 = vmatprep.mubr.bf16.mxu0 0
    %679 = vmatmul.mubr.bf16.gmra.mrb[0].mxu0 %v131
    %v680 = vpop.f32.mrb[0].mxu0
    %v681 = vadd.f32 0.0, %v680
    %v682 = vpop.f32.mrb[0].mxu0
    %v683 = vadd.f32 0.0, %v682
    %v684 = vpop.f32.mrb[0].mxu0
    %v685 = vadd.f32 0.0, %v684
    %v686 = vpop.f32.mrb[0].mxu0
    %v687 = vadd.f32 0.0, %v686
    %688 = vmatprep.mubr.bf16.mxu0 0
    %689 = vmatmul.mubr.bf16.gmra.mrb[0].mxu0 %v132
    %v690 = vpop.f32.mrb[0].mxu0
    %v691 = vadd.f32 0.0, %v690
    %v692 = vpop.f32.mrb[0].mxu0
    %v693 = vadd.f32 0.0, %v692
    %v694 = vpop.f32.mrb[0].mxu0
    %v695 = vadd.f32 0.0, %v694
    %v696 = vpop.f32.mrb[0].mxu0
    %v697 = vadd.f32 0.0, %v696
    %698 = vmatprep.mubr.bf16.mxu0 0
    %699 = vmatmul.mubr.bf16.gmra.mrb[0].mxu0 %v133
    %v700 = vpop.f32.mrb[0].mxu0
    %v701 = vadd.f32 0.0, %v700
    %v702 = vpop.f32.mrb[0].mxu0
    %v703 = vadd.f32 0.0, %v702
    %v704 = vpop.f32.mrb[0].mxu0
    %v705 = vadd.f32 0.0, %v704
    %v706 = vpop.f32.mrb[0].mxu0
    %v707 = vadd.f32 0.0, %v706
    %708 = vdwg.mxu0
    %709 = vmatprep.subr.bf16.mxu0 %v575
    %710 = vmatpush1.bf16.msra.mxu0 %v574
    %711 = vmatprep.subr.bf16.mxu0 %v579
    %712 = vmatpush1.bf16.msra.mxu0 %v578
    %713 = vmatprep.subr.bf16.mxu0 %v583
    %714 = vmatpush1.bf16.msra.mxu0 %v582
    %715 = vmatprep.subr.bf16.mxu0 %v587
    %716 = vmatpush1.bf16.msra.mxu0 %v586
    %717 = vmatprep.subr.bf16.mxu0 %v591
    %718 = vmatpush1.bf16.msra.mxu0 %v590
    %719 = vmatprep.subr.bf16.mxu0 %v595
    %720 = vmatpush1.bf16.msra.mxu0 %v594
    %721 = vmatprep.subr.bf16.mxu0 %v599
    %722 = vmatpush1.bf16.msra.mxu0 %v598
    %723 = vmatprep.subr.bf16.mxu0 %v603
    %724 = vmatpush1.bf16.msra.mxu0 %v602
    %725 = vmatprep.subr.bf16.mxu0 0
    %726 = vmatpush1.bf16.msra.mxu0 0
    %727 = vmatprep.subr.bf16.mxu0 0
    %728 = vmatpush1.bf16.msra.mxu0 0
    %729 = vmatprep.subr.bf16.mxu0 0
    %730 = vmatpush1.bf16.msra.mxu0 0
    %731 = vmatprep.subr.bf16.mxu0 0
    %732 = vmatpush1.bf16.msra.mxu0 0
    %733 = vmatprep.subr.bf16.mxu0 0
    %734 = vmatpush1.bf16.msra.mxu0 0
    %735 = vmatprep.subr.bf16.mxu0 0
    %736 = vmatpush1.bf16.msra.mxu0 0
    %737 = vmatprep.subr.bf16.mxu0 0
    %738 = vmatpush1.bf16.msra.mxu0 0
    %739 = vmatprep.subr.bf16.mxu0 0
    %740 = vmatpush1.bf16.msra.mxu0 0
    %741 = vmatprep.mubr.bf16.mxu0 0
    %742 = vmatmul.mubr.bf16.gmra.mrb[0].mxu0 %v130
    %v743 = vpop.f32.mrb[0].mxu0
    %v744 = vadd.f32 0.0, %v743
    %v745 = vpop.f32.mrb[0].mxu0
    %v746 = vadd.f32 0.0, %v745
    %v747 = vpop.f32.mrb[0].mxu0
    %v748 = vadd.f32 0.0, %v747
    %v749 = vpop.f32.mrb[0].mxu0
    %v750 = vadd.f32 0.0, %v749
    %751 = vmatprep.mubr.bf16.mxu0 0
    %752 = vmatmul.mubr.bf16.gmra.mrb[0].mxu0 %v131
    %v753 = vpop.f32.mrb[0].mxu0
    %v754 = vadd.f32 0.0, %v753
    %v755 = vpop.f32.mrb[0].mxu0
    %v756 = vadd.f32 0.0, %v755
    %v757 = vpop.f32.mrb[0].mxu0
    %v758 = vadd.f32 0.0, %v757
    %v759 = vpop.f32.mrb[0].mxu0
    %v760 = vadd.f32 0.0, %v759
    %761 = vmatprep.mubr.bf16.mxu0 0
    %762 = vmatmul.mubr.bf16.gmra.mrb[0].mxu0 %v132
    %v763 = vpop.f32.mrb[0].mxu0
    %v764 = vadd.f32 0.0, %v763
    %v765 = vpop.f32.mrb[0].mxu0
    %v766 = vadd.f32 0.0, %v765
    %v767 = vpop.f32.mrb[0].mxu0
    %v768 = vadd.f32 0.0, %v767
    %v769 = vpop.f32.mrb[0].mxu0
    %v770 = vadd.f32 0.0, %v769
    %771 = vmatprep.mubr.bf16.mxu0 0
    %772 = vmatmul.mubr.bf16.gmra.mrb[0].mxu0 %v133
    %v773 = vpop.f32.mrb[0].mxu0
    %v774 = vadd.f32 0.0, %v773
    %v775 = vpop.f32.mrb[0].mxu0
    %v776 = vadd.f32 0.0, %v775
    %v777 = vpop.f32.mrb[0].mxu0
    %v778 = vadd.f32 0.0, %v777
    %v779 = vpop.f32.mrb[0].mxu0
    %v780 = vadd.f32 0.0, %v779
    %781 = vdwg.mxu0
    %v782 = vxor.u32 %v333, 2147483648
    %v783 = vxor.u32 %v335, 2147483648
    %v784 = vxor.u32 %v406, 2147483648
    %v785 = vxor.u32 %v408, 2147483648
    %v786 = vxor.u32 %v337, 2147483648
    %v787 = vxor.u32 %v339, 2147483648
    %v788 = vxor.u32 %v410, 2147483648
    %v789 = vxor.u32 %v412, 2147483648
    %v790 = vxor.u32 %v343, 2147483648
    %v791 = vxor.u32 %v345, 2147483648
    %v792 = vxor.u32 %v416, 2147483648
    %v793 = vxor.u32 %v418, 2147483648
    %v794 = vxor.u32 %v347, 2147483648
    %v795 = vxor.u32 %v349, 2147483648
    %v796 = vxor.u32 %v420, 2147483648
    %v797 = vxor.u32 %v422, 2147483648
    %v798 = vxor.u32 %v353, 2147483648
    %v799 = vxor.u32 %v355, 2147483648
    %v800 = vxor.u32 %v426, 2147483648
    %v801 = vxor.u32 %v428, 2147483648
    %v802 = vxor.u32 %v357, 2147483648
    %v803 = vxor.u32 %v359, 2147483648
    %v804 = vxor.u32 %v430, 2147483648
    %v805 = vxor.u32 %v432, 2147483648
    %v806 = vxor.u32 %v363, 2147483648
    %v807 = vxor.u32 %v365, 2147483648
    %v808 = vxor.u32 %v436, 2147483648
    %v809 = vxor.u32 %v438, 2147483648
    %v810 = vxor.u32 %v367, 2147483648
    %v811 = vxor.u32 %v369, 2147483648
    %v812 = vxor.u32 %v440, 2147483648
    %v813 = vxor.u32 %v442, 2147483648
    %v814 = vmul.f32 %v782, 1.442695
    %v815 = vpow.pop %v814
    %v816 = vmul.f32 %v783, 1.442695
    %v817 = vpow.pop %v816
    %v818 = vmul.f32 %v784, 1.442695
    %v819 = vpow.pop %v818
    %v820 = vmul.f32 %v785, 1.442695
    %v821 = vpow.pop %v820
    %v822 = vmul.f32 %v786, 1.442695
    %v823 = vpow.pop %v822
    %v824 = vmul.f32 %v787, 1.442695
    %v825 = vpow.pop %v824
    %v826 = vmul.f32 %v788, 1.442695
    %v827 = vpow.pop %v826
    %v828 = vmul.f32 %v789, 1.442695
    %v829 = vpow.pop %v828
    %v830 = vmul.f32 %v790, 1.442695
    %v831 = vpow.pop %v830
    %v832 = vmul.f32 %v791, 1.442695
    %v833 = vpow.pop %v832
    %v834 = vmul.f32 %v792, 1.442695
    %v835 = vpow.pop %v834
    %v836 = vmul.f32 %v793, 1.442695
    %v837 = vpow.pop %v836
    %v838 = vmul.f32 %v794, 1.442695
    %v839 = vpow.pop %v838
    %v840 = vmul.f32 %v795, 1.442695
    %v841 = vpow.pop %v840
    %v842 = vmul.f32 %v796, 1.442695
    %v843 = vpow.pop %v842
    %v844 = vmul.f32 %v797, 1.442695
    %v845 = vpow.pop %v844
    %v846 = vmul.f32 %v798, 1.442695
    %v847 = vpow.pop %v846
    %v848 = vmul.f32 %v799, 1.442695
    %v849 = vpow.pop %v848
    %v850 = vmul.f32 %v800, 1.442695
    %v851 = vpow.pop %v850
    %v852 = vmul.f32 %v801, 1.442695
    %v853 = vpow.pop %v852
    %v854 = vmul.f32 %v802, 1.442695
    %v855 = vpow.pop %v854
    %v856 = vmul.f32 %v803, 1.442695
    %v857 = vpow.pop %v856
    %v858 = vmul.f32 %v804, 1.442695
    %v859 = vpow.pop %v858
    %v860 = vmul.f32 %v805, 1.442695
    %v861 = vpow.pop %v860
    %v862 = vmul.f32 %v806, 1.442695
    %v863 = vpow.pop %v862
    %v864 = vmul.f32 %v807, 1.442695
    %v865 = vpow.pop %v864
    %v866 = vmul.f32 %v808, 1.442695
    %v867 = vpow.pop %v866
    %v868 = vmul.f32 %v809, 1.442695
    %v869 = vpow.pop %v868
    %v870 = vmul.f32 %v810, 1.442695
    %v871 = vpow.pop %v870
    %v872 = vmul.f32 %v811, 1.442695
    %v873 = vpow.pop %v872
    %v874 = vmul.f32 %v812, 1.442695
    %v875 = vpow.pop %v874
    %v876 = vmul.f32 %v813, 1.442695
    %v877 = vpow.pop %v876
    %v878 = vadd.f32 %v815, 1.0
    %v879 = vadd.f32 %v817, 1.0
    %v880 = vadd.f32 %v819, 1.0
    %v881 = vadd.f32 %v821, 1.0
    %v882 = vadd.f32 %v823, 1.0
    %v883 = vadd.f32 %v825, 1.0
    %v884 = vadd.f32 %v827, 1.0
    %v885 = vadd.f32 %v829, 1.0
    %v886 = vadd.f32 %v831, 1.0
    %v887 = vadd.f32 %v833, 1.0
    %v888 = vadd.f32 %v835, 1.0
    %v889 = vadd.f32 %v837, 1.0
    %v890 = vadd.f32 %v839, 1.0
    %v891 = vadd.f32 %v841, 1.0
    %v892 = vadd.f32 %v843, 1.0
    %v893 = vadd.f32 %v845, 1.0
    %v894 = vadd.f32 %v847, 1.0
    %v895 = vadd.f32 %v849, 1.0
    %v896 = vadd.f32 %v851, 1.0
    %v897 = vadd.f32 %v853, 1.0
    %v898 = vadd.f32 %v855, 1.0
    %v899 = vadd.f32 %v857, 1.0
    %v900 = vadd.f32 %v859, 1.0
    %v901 = vadd.f32 %v861, 1.0
    %v902 = vadd.f32 %v863, 1.0
    %v903 = vadd.f32 %v865, 1.0
    %v904 = vadd.f32 %v867, 1.0
    %v905 = vadd.f32 %v869, 1.0
    %v906 = vadd.f32 %v871, 1.0
    %v907 = vadd.f32 %v873, 1.0
    %v908 = vadd.f32 %v875, 1.0
    %v909 = vadd.f32 %v877, 1.0
    %v910 = vrcp.pop %v878
    %v911 = vmul.f32 1.0, %v910
    %v912 = vrcp.pop %v879
    %v913 = vmul.f32 1.0, %v912
    %v914 = vrcp.pop %v880
    %v915 = vmul.f32 1.0, %v914
    %v916 = vrcp.pop %v881
    %v917 = vmul.f32 1.0, %v916
    %v918 = vrcp.pop %v882
    %v919 = vmul.f32 1.0, %v918
    %v920 = vrcp.pop %v883
    %v921 = vmul.f32 1.0, %v920
    %v922 = vrcp.pop %v884
    %v923 = vmul.f32 1.0, %v922
    %v924 = vrcp.pop %v885
    %v925 = vmul.f32 1.0, %v924
    %v926 = vrcp.pop %v886
    %v927 = vmul.f32 1.0, %v926
    %v928 = vrcp.pop %v887
    %v929 = vmul.f32 1.0, %v928
    %v930 = vrcp.pop %v888
    %v931 = vmul.f32 1.0, %v930
    %v932 = vrcp.pop %v889
    %v933 = vmul.f32 1.0, %v932
    %v934 = vrcp.pop %v890
    %v935 = vmul.f32 1.0, %v934
    %v936 = vrcp.pop %v891
    %v937 = vmul.f32 1.0, %v936
    %v938 = vrcp.pop %v892
    %v939 = vmul.f32 1.0, %v938
    %v940 = vrcp.pop %v893
    %v941 = vmul.f32 1.0, %v940
    %v942 = vrcp.pop %v894
    %v943 = vmul.f32 1.0, %v942
    %v944 = vrcp.pop %v895
    %v945 = vmul.f32 1.0, %v944
    %v946 = vrcp.pop %v896
    %v947 = vmul.f32 1.0, %v946
    %v948 = vrcp.pop %v897
    %v949 = vmul.f32 1.0, %v948
    %v950 = vrcp.pop %v898
    %v951 = vmul.f32 1.0, %v950
    %v952 = vrcp.pop %v899
    %v953 = vmul.f32 1.0, %v952
    %v954 = vrcp.pop %v900
    %v955 = vmul.f32 1.0, %v954
    %v956 = vrcp.pop %v901
    %v957 = vmul.f32 1.0, %v956
    %v958 = vrcp.pop %v902
    %v959 = vmul.f32 1.0, %v958
    %v960 = vrcp.pop %v903
    %v961 = vmul.f32 1.0, %v960
    %v962 = vrcp.pop %v904
    %v963 = vmul.f32 1.0, %v962
    %v964 = vrcp.pop %v905
    %v965 = vmul.f32 1.0, %v964
    %v966 = vrcp.pop %v906
    %v967 = vmul.f32 1.0, %v966
    %v968 = vrcp.pop %v907
    %v969 = vmul.f32 1.0, %v968
    %v970 = vrcp.pop %v908
    %v971 = vmul.f32 1.0, %v970
    %v972 = vrcp.pop %v909
    %v973 = vmul.f32 1.0, %v972
    %v974 = vmul.f32 %v333, %v911
    %v975 = vmul.f32 %v335, %v913
    %v976 = vmul.f32 %v406, %v915
    %v977 = vmul.f32 %v408, %v917
    %v978 = vmul.f32 %v337, %v919
    %v979 = vmul.f32 %v339, %v921
    %v980 = vmul.f32 %v410, %v923
    %v981 = vmul.f32 %v412, %v925
    %v982 = vmul.f32 %v343, %v927
    %v983 = vmul.f32 %v345, %v929
    %v984 = vmul.f32 %v416, %v931
    %v985 = vmul.f32 %v418, %v933
    %v986 = vmul.f32 %v347, %v935
    %v987 = vmul.f32 %v349, %v937
    %v988 = vmul.f32 %v420, %v939
    %v989 = vmul.f32 %v422, %v941
    %v990 = vmul.f32 %v353, %v943
    %v991 = vmul.f32 %v355, %v945
    %v992 = vmul.f32 %v426, %v947
    %v993 = vmul.f32 %v428, %v949
    %v994 = vmul.f32 %v357, %v951
    %v995 = vmul.f32 %v359, %v953
    %v996 = vmul.f32 %v430, %v955
    %v997 = vmul.f32 %v432, %v957
    %v998 = vmul.f32 %v363, %v959
    %v999 = vmul.f32 %v365, %v961
    %v1000 = vmul.f32 %v436, %v963
    %v1001 = vmul.f32 %v438, %v965
    %v1002 = vmul.f32 %v367, %v967
    %v1003 = vmul.f32 %v369, %v969
    %v1004 = vmul.f32 %v440, %v971
    %v1005 = vmul.f32 %v442, %v973
    %v1006 = vmul.f32 %v974, %v671
    %v1007 = vmul.f32 %v975, %v673
    %v1008 = vmul.f32 %v976, %v744
    %v1009 = vmul.f32 %v977, %v746
    %v1010 = vmul.f32 %v978, %v675
    %v1011 = vmul.f32 %v979, %v677
    %v1012 = vmul.f32 %v980, %v748
    %v1013 = vmul.f32 %v981, %v750
    %v1014 = vmul.f32 %v982, %v681
    %v1015 = vmul.f32 %v983, %v683
    %v1016 = vmul.f32 %v984, %v754
    %v1017 = vmul.f32 %v985, %v756
    %v1018 = vmul.f32 %v986, %v685
    %v1019 = vmul.f32 %v987, %v687
    %v1020 = vmul.f32 %v988, %v758
    %v1021 = vmul.f32 %v989, %v760
    %v1022 = vmul.f32 %v990, %v691
    %v1023 = vmul.f32 %v991, %v693
    %v1024 = vmul.f32 %v992, %v764
    %v1025 = vmul.f32 %v993, %v766
    %v1026 = vmul.f32 %v994, %v695
    %v1027 = vmul.f32 %v995, %v697
    %v1028 = vmul.f32 %v996, %v768
    %v1029 = vmul.f32 %v997, %v770
    %v1030 = vmul.f32 %v998, %v701
    %v1031 = vmul.f32 %v999, %v703
    %v1032 = vmul.f32 %v1000, %v774
    %v1033 = vmul.f32 %v1001, %v776
    %v1034 = vmul.f32 %v1002, %v705
    %v1035 = vmul.f32 %v1003, %v707
    %v1036 = vmul.f32 %v1004, %v778
    %v1037 = vmul.f32 %v1005, %v780
    %v1038 = vpack.c.bf16 %v1010, %v1006
    %v1039 = vpack.c.bf16 %v1011, %v1007
    %v1040 = vpack.c.bf16 %v1012, %v1008
    %v1041 = vpack.c.bf16 %v1013, %v1009
    %v1042 = vpack.c.bf16 %v1018, %v1014
    %v1043 = vpack.c.bf16 %v1019, %v1015
    %v1044 = vpack.c.bf16 %v1020, %v1016
    %v1045 = vpack.c.bf16 %v1021, %v1017
    %v1046 = vpack.c.bf16 %v1026, %v1022
    %v1047 = vpack.c.bf16 %v1027, %v1023
    %v1048 = vpack.c.bf16 %v1028, %v1024
    %v1049 = vpack.c.bf16 %v1029, %v1025
    %v1050 = vpack.c.bf16 %v1034, %v1030
    %v1051 = vpack.c.bf16 %v1035, %v1031
    %v1052 = vpack.c.bf16 %v1036, %v1032
    %v1053 = vpack.c.bf16 %v1037, %v1033
    %v1054 = vld [vmem:[#allocation9] sm:$0xf]
    %v1055 = vld [vmem:[#allocation9 + $0x4] sm:$0xf]
    %v1056 = vld [vmem:[#allocation9 + $0x8] sm:$0xf]
    %v1057 = vld [vmem:[#allocation9 + $0xc] sm:$0xf]
    %v1058 = vld [vmem:[#allocation9 + $0x10] sm:$0xf]
    %v1059 = vld [vmem:[#allocation9 + $0x14] sm:$0xf]
    %v1060 = vld [vmem:[#allocation9 + $0x18] sm:$0xf]
    %v1061 = vld [vmem:[#allocation9 + $0x1c] sm:$0xf]
    %v1062 = vld [vmem:[#allocation9 + $0x20] sm:$0xf]
    %v1063 = vld [vmem:[#allocation9 + $0x24] sm:$0xf]
    %v1064 = vld [vmem:[#allocation9 + $0x28] sm:$0xf]
    %v1065 = vld [vmem:[#allocation9 + $0x2c] sm:$0xf]
    %v1066 = vld [vmem:[#allocation9 + $0x30] sm:$0xf]
    %v1067 = vld [vmem:[#allocation9 + $0x34] sm:$0xf]
    %v1068 = vld [vmem:[#allocation9 + $0x38] sm:$0xf]
    %v1069 = vld [vmem:[#allocation9 + $0x3c] sm:$0xf]
    %v1070 = vld [vmem:[#allocation9 + $0x40] sm:$0xf]
    %v1071 = vld [vmem:[#allocation9 + $0x44] sm:$0xf]
    %v1072 = vld [vmem:[#allocation9 + $0x48] sm:$0xf]
    %v1073 = vld [vmem:[#allocation9 + $0x4c] sm:$0xf]
    %v1074 = vld [vmem:[#allocation9 + $0x50] sm:$0xf]
    %v1075 = vld [vmem:[#allocation9 + $0x54] sm:$0xf]
    %v1076 = vld [vmem:[#allocation9 + $0x58] sm:$0xf]
    %v1077 = vld [vmem:[#allocation9 + $0x5c] sm:$0xf]
    %v1078 = vld [vmem:[#allocation9 + $0x60] sm:$0xf]
    %v1079 = vld [vmem:[#allocation9 + $0x64] sm:$0xf]
    %v1080 = vld [vmem:[#allocation9 + $0x68] sm:$0xf]
    %v1081 = vld [vmem:[#allocation9 + $0x6c] sm:$0xf]
    %v1082 = vld [vmem:[#allocation9 + $0x70] sm:$0xf]
    %v1083 = vld [vmem:[#allocation9 + $0x74] sm:$0xf]
    %v1084 = vld [vmem:[#allocation9 + $0x78] sm:$0xf]
    %v1085 = vld [vmem:[#allocation9 + $0x7c] sm:$0xf]
    %v1086 = vld [vmem:[#allocation9 + $0x80] sm:$0xf]
    %v1087 = vld [vmem:[#allocation9 + $0x84] sm:$0xf]
    %v1088 = vld [vmem:[#allocation9 + $0x88] sm:$0xf]
    %v1089 = vld [vmem:[#allocation9 + $0x8c] sm:$0xf]
    %v1090 = vld [vmem:[#allocation9 + $0x90] sm:$0xf]
    %v1091 = vld [vmem:[#allocation9 + $0x94] sm:$0xf]
    %v1092 = vld [vmem:[#allocation9 + $0x98] sm:$0xf]
    %v1093 = vld [vmem:[#allocation9 + $0x9c] sm:$0xf]
    %v1094 = vld [vmem:[#allocation9 + $0xa0] sm:$0xf]
    %v1095 = vld [vmem:[#allocation9 + $0xa4] sm:$0xf]
    %v1096 = vld [vmem:[#allocation9 + $0xa8] sm:$0xf]
    %v1097 = vld [vmem:[#allocation9 + $0xac] sm:$0xf]
    %v1098 = vld [vmem:[#allocation9 + $0xb0] sm:$0xf]
    %v1099 = vld [vmem:[#allocation9 + $0xb4] sm:$0xf]
    %v1100 = vld [vmem:[#allocation9 + $0xb8] sm:$0xf]
    %v1101 = vld [vmem:[#allocation9 + $0xbc] sm:$0xf]
    %v1102 = vld [vmem:[#allocation9 + $0xc0] sm:$0xf]
    %v1103 = vld [vmem:[#allocation9 + $0xc4] sm:$0xf]
    %v1104 = vld [vmem:[#allocation9 + $0xc8] sm:$0xf]
    %v1105 = vld [vmem:[#allocation9 + $0xcc] sm:$0xf]
    %v1106 = vld [vmem:[#allocation9 + $0xd0] sm:$0xf]
    %v1107 = vld [vmem:[#allocation9 + $0xd4] sm:$0xf]
    %v1108 = vld [vmem:[#allocation9 + $0xd8] sm:$0xf]
    %v1109 = vld [vmem:[#allocation9 + $0xdc] sm:$0xf]
    %v1110 = vld [vmem:[#allocation9 + $0xe0] sm:$0xf]
    %v1111 = vld [vmem:[#allocation9 + $0xe4] sm:$0xf]
    %v1112 = vld [vmem:[#allocation9 + $0xe8] sm:$0xf]
    %v1113 = vld [vmem:[#allocation9 + $0xec] sm:$0xf]
    %v1114 = vld [vmem:[#allocation9 + $0xf0] sm:$0xf]
    %v1115 = vld [vmem:[#allocation9 + $0xf4] sm:$0xf]
    %v1116 = vld [vmem:[#allocation9 + $0xf8] sm:$0xf]
    %v1117 = vld [vmem:[#allocation9 + $0xfc] sm:$0xf]
    %v1182 = vunpack.c.l.b16 %v1054
    %v1183 = vunpack.c.l.b16 %v1055
    %v1184 = vunpack.c.l.b16 %v1056
    %v1185 = vunpack.c.l.b16 %v1057
    %v1186 = vunpack.c.l.b16 %v1058
    %v1187 = vunpack.c.l.b16 %v1059
    %v1188 = vunpack.c.l.b16 %v1060
    %v1189 = vunpack.c.l.b16 %v1061
    %v1190 = vunpack.c.l.b16 %v1062
    %v1191 = vunpack.c.l.b16 %v1063
    %v1192 = vunpack.c.l.b16 %v1064
    %v1193 = vunpack.c.l.b16 %v1065
    %v1194 = vunpack.c.l.b16 %v1066
    %v1195 = vunpack.c.l.b16 %v1067
    %v1196 = vunpack.c.l.b16 %v1068
    %v1197 = vunpack.c.l.b16 %v1069
    %v1198 = vunpack.c.l.b16 %v1070
    %v1199 = vunpack.c.l.b16 %v1071
    %v1200 = vunpack.c.l.b16 %v1072
    %v1201 = vunpack.c.l.b16 %v1073
    %v1202 = vunpack.c.l.b16 %v1074
    %v1203 = vunpack.c.l.b16 %v1075
    %v1204 = vunpack.c.l.b16 %v1076
    %v1205 = vunpack.c.l.b16 %v1077
    %v1206 = vunpack.c.l.b16 %v1078
    %v1207 = vunpack.c.l.b16 %v1079
    %v1208 = vunpack.c.l.b16 %v1080
    %v1209 = vunpack.c.l.b16 %v1081
    %v1210 = vunpack.c.l.b16 %v1082
    %v1211 = vunpack.c.l.b16 %v1083
    %v1212 = vunpack.c.l.b16 %v1084
    %v1213 = vunpack.c.l.b16 %v1085
    %v1214 = vunpack.c.l.b16 %v1086
    %v1215 = vunpack.c.l.b16 %v1087
    %v1216 = vunpack.c.l.b16 %v1088
    %v1217 = vunpack.c.l.b16 %v1089
    %v1218 = vunpack.c.l.b16 %v1090
    %v1219 = vunpack.c.l.b16 %v1091
    %v1220 = vunpack.c.l.b16 %v1092
    %v1221 = vunpack.c.l.b16 %v1093
    %v1222 = vunpack.c.l.b16 %v1094
    %v1223 = vunpack.c.l.b16 %v1095
    %v1224 = vunpack.c.l.b16 %v1096
    %v1225 = vunpack.c.l.b16 %v1097
    %v1226 = vunpack.c.l.b16 %v1098
    %v1227 = vunpack.c.l.b16 %v1099
    %v1228 = vunpack.c.l.b16 %v1100
    %v1229 = vunpack.c.l.b16 %v1101
    %v1230 = vunpack.c.l.b16 %v1102
    %v1231 = vunpack.c.l.b16 %v1103
    %v1232 = vunpack.c.l.b16 %v1104
    %v1233 = vunpack.c.l.b16 %v1105
    %v1234 = vunpack.c.l.b16 %v1106
    %v1235 = vunpack.c.l.b16 %v1107
    %v1236 = vunpack.c.l.b16 %v1108
    %v1237 = vunpack.c.l.b16 %v1109
    %v1238 = vunpack.c.l.b16 %v1110
    %v1239 = vunpack.c.l.b16 %v1111
    %v1240 = vunpack.c.l.b16 %v1112
    %v1241 = vunpack.c.l.b16 %v1113
    %v1242 = vunpack.c.l.b16 %v1114
    %v1243 = vunpack.c.l.b16 %v1115
    %v1244 = vunpack.c.l.b16 %v1116
    %v1245 = vunpack.c.l.b16 %v1117
    %v1246 = vpack.c.b16 %v1183, %v1182
    %v1247 = vpack.c.b16 %v1185, %v1184
    %v1248 = vpack.c.b16 %v1187, %v1186
    %v1249 = vpack.c.b16 %v1189, %v1188
    %v1250 = vpack.c.b16 %v1191, %v1190
    %v1251 = vpack.c.b16 %v1193, %v1192
    %v1252 = vpack.c.b16 %v1195, %v1194
    %v1253 = vpack.c.b16 %v1197, %v1196
    %v1254 = vpack.c.b16 %v1199, %v1198
    %v1255 = vpack.c.b16 %v1201, %v1200
    %v1256 = vpack.c.b16 %v1203, %v1202
    %v1257 = vpack.c.b16 %v1205, %v1204
    %v1258 = vpack.c.b16 %v1207, %v1206
    %v1259 = vpack.c.b16 %v1209, %v1208
    %v1260 = vpack.c.b16 %v1211, %v1210
    %v1261 = vpack.c.b16 %v1213, %v1212
    %v1262 = vpack.c.b16 %v1215, %v1214
    %v1263 = vpack.c.b16 %v1217, %v1216
    %v1264 = vpack.c.b16 %v1219, %v1218
    %v1265 = vpack.c.b16 %v1221, %v1220
    %v1266 = vpack.c.b16 %v1223, %v1222
    %v1267 = vpack.c.b16 %v1225, %v1224
    %v1268 = vpack.c.b16 %v1227, %v1226
    %v1269 = vpack.c.b16 %v1229, %v1228
    %v1270 = vpack.c.b16 %v1231, %v1230
    %v1271 = vpack.c.b16 %v1233, %v1232
    %v1272 = vpack.c.b16 %v1235, %v1234
    %v1273 = vpack.c.b16 %v1237, %v1236
    %v1274 = vpack.c.b16 %v1239, %v1238
    %v1275 = vpack.c.b16 %v1241, %v1240
    %v1276 = vpack.c.b16 %v1243, %v1242
    %v1277 = vpack.c.b16 %v1245, %v1244
    %1310 = vmatprep.subr.bf16.mxu0 0
    %1311 = vmatpush1.bf16.msra.mxu0 %v1246
    %1312 = vmatprep.subr.bf16.mxu0 0
    %1313 = vmatpush1.bf16.msra.mxu0 %v1247
    %1314 = vmatprep.subr.bf16.mxu0 0
    %1315 = vmatpush1.bf16.msra.mxu0 %v1248
    %1316 = vmatprep.subr.bf16.mxu0 0
    %1317 = vmatpush1.bf16.msra.mxu0 %v1249
    %1318 = vmatprep.subr.bf16.mxu0 0
    %1319 = vmatpush1.bf16.msra.mxu0 %v1250
    %1320 = vmatprep.subr.bf16.mxu0 0
    %1321 = vmatpush1.bf16.msra.mxu0 %v1251
    %1322 = vmatprep.subr.bf16.mxu0 0
    %1323 = vmatpush1.bf16.msra.mxu0 %v1252
    %1324 = vmatprep.subr.bf16.mxu0 0
    %1325 = vmatpush1.bf16.msra.mxu0 %v1253
    %1326 = vmatprep.subr.bf16.mxu0 0
    %1327 = vmatpush1.bf16.msra.mxu0 %v1254
    %1328 = vmatprep.subr.bf16.mxu0 0
    %1329 = vmatpush1.bf16.msra.mxu0 %v1255
    %1330 = vmatprep.subr.bf16.mxu0 0
    %1331 = vmatpush1.bf16.msra.mxu0 %v1256
    %1332 = vmatprep.subr.bf16.mxu0 0
    %1333 = vmatpush1.bf16.msra.mxu0 %v1257
    %1334 = vmatprep.subr.bf16.mxu0 0
    %1335 = vmatpush1.bf16.msra.mxu0 %v1258
    %1336 = vmatprep.subr.bf16.mxu0 0
    %1337 = vmatpush1.bf16.msra.mxu0 %v1259
    %1338 = vmatprep.subr.bf16.mxu0 0
    %1339 = vmatpush1.bf16.msra.mxu0 %v1260
    %1340 = vmatprep.subr.bf16.mxu0 0
    %1341 = vmatpush1.bf16.msra.mxu0 %v1261
    %1342 = vmatprep.mubr.bf16.mxu0 %v1039
    %1343 = vmatmul.mubr.bf16.gmra.mrb[0].mxu0 %v1038
    %v1344 = vpop.f32.mrb[0].mxu0
    %v1345 = vadd.f32 0.0, %v1344
    %v1346 = vpop.f32.mrb[0].mxu0
    %v1347 = vpop.f32.mrb[0].mxu0
    %v1348 = vadd.f32 0.0, %v1347
    %v1349 = vpop.f32.mrb[0].mxu0
    %1350 = vmatprep.mubr.bf16.mxu0 %v1043
    %1351 = vmatmul.mubr.bf16.gmra.mrb[0].mxu0 %v1042
    %v1352 = vpop.f32.mrb[0].mxu0
    %v1353 = vadd.f32 0.0, %v1352
    %v1354 = vpop.f32.mrb[0].mxu0
    %v1355 = vpop.f32.mrb[0].mxu0
    %v1356 = vadd.f32 0.0, %v1355
    %v1357 = vpop.f32.mrb[0].mxu0
    %1358 = vmatprep.mubr.bf16.mxu0 %v1047
    %1359 = vmatmul.mubr.bf16.gmra.mrb[0].mxu0 %v1046
    %v1360 = vpop.f32.mrb[0].mxu0
    %v1361 = vadd.f32 0.0, %v1360
    %v1362 = vpop.f32.mrb[0].mxu0
    %v1363 = vpop.f32.mrb[0].mxu0
    %v1364 = vadd.f32 0.0, %v1363
    %v1365 = vpop.f32.mrb[0].mxu0
    %1366 = vmatprep.mubr.bf16.mxu0 %v1051
    %1367 = vmatmul.mubr.bf16.gmra.mrb[0].mxu0 %v1050
    %v1368 = vpop.f32.mrb[0].mxu0
    %v1369 = vadd.f32 0.0, %v1368
    %v1370 = vpop.f32.mrb[0].mxu0
    %v1371 = vpop.f32.mrb[0].mxu0
    %v1372 = vadd.f32 0.0, %v1371
    %v1373 = vpop.f32.mrb[0].mxu0
    %1374 = vdwg.mxu0
    %1375 = vmatprep.subr.bf16.mxu0 0
    %1376 = vmatpush1.bf16.msra.mxu0 %v1262
    %1377 = vmatprep.subr.bf16.mxu0 0
    %1378 = vmatpush1.bf16.msra.mxu0 %v1263
    %1379 = vmatprep.subr.bf16.mxu0 0
    %1380 = vmatpush1.bf16.msra.mxu0 %v1264
    %1381 = vmatprep.subr.bf16.mxu0 0
    %1382 = vmatpush1.bf16.msra.mxu0 %v1265
    %1383 = vmatprep.subr.bf16.mxu0 0
    %1384 = vmatpush1.bf16.msra.mxu0 %v1266
    %1385 = vmatprep.subr.bf16.mxu0 0
    %1386 = vmatpush1.bf16.msra.mxu0 %v1267
    %1387 = vmatprep.subr.bf16.mxu0 0
    %1388 = vmatpush1.bf16.msra.mxu0 %v1268
    %1389 = vmatprep.subr.bf16.mxu0 0
    %1390 = vmatpush1.bf16.msra.mxu0 %v1269
    %1391 = vmatprep.subr.bf16.mxu0 0
    %1392 = vmatpush1.bf16.msra.mxu0 %v1270
    %1393 = vmatprep.subr.bf16.mxu0 0
    %1394 = vmatpush1.bf16.msra.mxu0 %v1271
    %1395 = vmatprep.subr.bf16.mxu0 0
    %1396 = vmatpush1.bf16.msra.mxu0 %v1272
    %1397 = vmatprep.subr.bf16.mxu0 0
    %1398 = vmatpush1.bf16.msra.mxu0 %v1273
    %1399 = vmatprep.subr.bf16.mxu0 0
    %1400 = vmatpush1.bf16.msra.mxu0 %v1274
    %1401 = vmatprep.subr.bf16.mxu0 0
    %1402 = vmatpush1.bf16.msra.mxu0 %v1275
    %1403 = vmatprep.subr.bf16.mxu0 0
    %1404 = vmatpush1.bf16.msra.mxu0 %v1276
    %1405 = vmatprep.subr.bf16.mxu0 0
    %1406 = vmatpush1.bf16.msra.mxu0 %v1277
    %1407 = vmatprep.mubr.bf16.mxu0 %v1041
    %1408 = vmatmul.mubr.bf16.gmra.mrb[0].mxu0 %v1040
    %v1409 = vpop.f32.mrb[0].mxu0
    %v1410 = vadd.f32 %v1345, %v1409
    %v1411 = vpop.f32.mrb[0].mxu0
    %v1412 = vpop.f32.mrb[0].mxu0
    %v1413 = vadd.f32 %v1348, %v1412
    %v1414 = vpop.f32.mrb[0].mxu0
    %1415 = vmatprep.mubr.bf16.mxu0 %v1045
    %1416 = vmatmul.mubr.bf16.gmra.mrb[0].mxu0 %v1044
    %v1417 = vpop.f32.mrb[0].mxu0
    %v1418 = vadd.f32 %v1353, %v1417
    %v1419 = vpop.f32.mrb[0].mxu0
    %v1420 = vpop.f32.mrb[0].mxu0
    %v1421 = vadd.f32 %v1356, %v1420
    %v1422 = vpop.f32.mrb[0].mxu0
    %1423 = vmatprep.mubr.bf16.mxu0 %v1049
    %1424 = vmatmul.mubr.bf16.gmra.mrb[0].mxu0 %v1048
    %v1425 = vpop.f32.mrb[0].mxu0
    %v1426 = vadd.f32 %v1361, %v1425
    %v1427 = vpop.f32.mrb[0].mxu0
    %v1428 = vpop.f32.mrb[0].mxu0
    %v1429 = vadd.f32 %v1364, %v1428
    %v1430 = vpop.f32.mrb[0].mxu0
    %1431 = vmatprep.mubr.bf16.mxu0 %v1053
    %1432 = vmatmul.mubr.bf16.gmra.mrb[0].mxu0 %v1052
    %v1433 = vpop.f32.mrb[0].mxu0
    %v1434 = vadd.f32 %v1369, %v1433
    %v1435 = vpop.f32.mrb[0].mxu0
    %v1436 = vpop.f32.mrb[0].mxu0
    %v1437 = vadd.f32 %v1372, %v1436
    %v1438 = vpop.f32.mrb[0].mxu0
    %1439 = vdwg.mxu0
    %p1440 = scmp.eq.s32.totalorder 0, 0
    // Predicated region
    $region34: #{tpu_custom_call.1} parent=1 // pred_check
      %p1441 = pneg %p1440
    $region35: #{tpu_custom_call.1} parent=1 // pred_check_branch
      %1443 = sbr.rel (%p1441) target = $region37
    $region36: #{tpu_custom_call.1} parent=1 // pred_region
      %1444 = vst [vmem:[#allocation2] sm:$0xff] %v1410
      %1445 = vst [vmem:[#allocation2 + $0x8] sm:$0xff] %v1413
      %1446 = vst [vmem:[#allocation2 + $0x10] sm:$0xff] %v1418
      %1447 = vst [vmem:[#allocation2 + $0x18] sm:$0xff] %v1421
      %1448 = vst [vmem:[#allocation2 + $0x20] sm:$0xff] %v1426
      %1449 = vst [vmem:[#allocation2 + $0x28] sm:$0xff] %v1429
      %1450 = vst [vmem:[#allocation2 + $0x30] sm:$0xff] %v1434
      %1451 = vst [vmem:[#allocation2 + $0x38] sm:$0xff] %v1437
    $region37: #{tpu_custom_call.1} parent=1 // pred_fallthru
      _
    %p1452 = scmp.gt.s32.totalorder 0, 0
    // Predicated region
    $region38: #{tpu_custom_call.1} parent=1 // pred_check
      %p1453 = pneg %p1452
    $region39: #{tpu_custom_call.1} parent=1 // pred_check_branch
      %1455 = sbr.rel (%p1453) target = $region41
    $region40: #{tpu_custom_call.1} parent=1 // pred_region
      %v1456 = vld [vmem:[#allocation2] sm:$0xff]
      %v1457 = vld [vmem:[#allocation2 + $0x8] sm:$0xff]
      %v1458 = vld [vmem:[#allocation2 + $0x10] sm:$0xff]
      %v1459 = vld [vmem:[#allocation2 + $0x18] sm:$0xff]
      %v1460 = vld [vmem:[#allocation2 + $0x20] sm:$0xff]
      %v1461 = vld [vmem:[#allocation2 + $0x28] sm:$0xff]
      %v1462 = vld [vmem:[#allocation2 + $0x30] sm:$0xff]
      %v1463 = vld [vmem:[#allocation2 + $0x38] sm:$0xff]
      %v1464 = vadd.f32 %v1456, %v1410
      %v1465 = vadd.f32 %v1457, %v1413
      %v1466 = vadd.f32 %v1458, %v1418
      %v1467 = vadd.f32 %v1459, %v1421
      %v1468 = vadd.f32 %v1460, %v1426
      %v1469 = vadd.f32 %v1461, %v1429
      %v1470 = vadd.f32 %v1462, %v1434
      %v1471 = vadd.f32 %v1463, %v1437
      %1472 = vst [vmem:[#allocation2] sm:$0xff] %v1464
      %1473 = vst [vmem:[#allocation2 + $0x8] sm:$0xff] %v1465
      %1474 = vst [vmem:[#allocation2 + $0x10] sm:$0xff] %v1466
      %1475 = vst [vmem:[#allocation2 + $0x18] sm:$0xff] %v1467
      %1476 = vst [vmem:[#allocation2 + $0x20] sm:$0xff] %v1468
      %1477 = vst [vmem:[#allocation2 + $0x28] sm:$0xff] %v1469
      %1478 = vst [vmem:[#allocation2 + $0x30] sm:$0xff] %v1470
      %1479 = vst [vmem:[#allocation2 + $0x38] sm:$0xff] %v1471
    $region41: #{tpu_custom_call.1} parent=1 // pred_fallthru
      _
    // Predicated region
    $region42: #{tpu_custom_call.1} parent=1 // pred_check
      %p1480 = pneg %p1440
    $region43: #{tpu_custom_call.1} parent=1 // pred_check_branch
      %1482 = sbr.rel (%p1480) target = $region45
    $region44: #{tpu_custom_call.1} parent=1 // pred_region
      %v1483 = vld [vmem:[#allocation2] sm:$0xff]
      %v1484 = vld [vmem:[#allocation2 + $0x8] sm:$0xff]
      %v1485 = vld [vmem:[#allocation2 + $0x10] sm:$0xff]
      %v1486 = vld [vmem:[#allocation2 + $0x18] sm:$0xff]
      %v1487 = vld [vmem:[#allocation2 + $0x20] sm:$0xff]
      %v1488 = vld [vmem:[#allocation2 + $0x28] sm:$0xff]
      %v1489 = vld [vmem:[#allocation2 + $0x30] sm:$0xff]
      %v1490 = vld [vmem:[#allocation2 + $0x38] sm:$0xff]
      %v1491 = vpack.c.bf16 %v1484, %v1483
      %v1492 = vpack.c.bf16 %v1486, %v1485
      %v1493 = vpack.c.bf16 %v1488, %v1487
      %v1494 = vpack.c.bf16 %v1490, %v1489
      %v1499 = vunpack.c.l.b16 %v1491
      %v1500 = vunpack.c.h.b16 %v1491
      %v1501 = vunpack.c.l.b16 %v1492
      %v1502 = vunpack.c.h.b16 %v1492
      %v1503 = vunpack.c.l.b16 %v1493
      %v1504 = vunpack.c.h.b16 %v1493
      %v1505 = vunpack.c.l.b16 %v1494
      %v1506 = vunpack.c.h.b16 %v1494
      %v1507 = vpack.c.b16 %v1499, %v1499
      %v1508 = vpack.c.b16 %v1500, %v1500
      %v1509 = vpack.c.b16 %v1501, %v1501
      %v1510 = vpack.c.b16 %v1502, %v1502
      %v1511 = vpack.c.b16 %v1503, %v1503
      %v1512 = vpack.c.b16 %v1504, %v1504
      %v1513 = vpack.c.b16 %v1505, %v1505
      %v1514 = vpack.c.b16 %v1506, %v1506
      %1523 = vst [vmem:[#allocation11] sm:$0xf] %v1507
      %1524 = vst [vmem:[#allocation11 + $0x4] sm:$0xf] %v1508
      %1525 = vst [vmem:[#allocation11 + $0x8] sm:$0xf] %v1509
      %1526 = vst [vmem:[#allocation11 + $0xc] sm:$0xf] %v1510
      %1527 = vst [vmem:[#allocation11 + $0x10] sm:$0xf] %v1511
      %1528 = vst [vmem:[#allocation11 + $0x14] sm:$0xf] %v1512
      %1529 = vst [vmem:[#allocation11 + $0x18] sm:$0xf] %v1513
      %1530 = vst [vmem:[#allocation11 + $0x1c] sm:$0xf] %v1514
    $region45: #{tpu_custom_call.1} parent=1 // pred_fallthru
      _
    // Predicated region
    $region46: #{tpu_custom_call.1} parent=1 // pred_check
      _
    $region47: #{tpu_custom_call.1} parent=1 // pred_check_branch
      %1532 = sbr.rel (0) target = $region49
    $region48: #{tpu_custom_call.1} parent=1 // pred_region
      %s1534 = ssub.s32 512, 512
      %1535 = vsyncadd [#allocation5], %s1534
      %s1536 = sshll.u32 [#allocation11], 4
      %s1537 = int_to_ptr.vmem [resolvable:$true] %s1536
      %1542 = dma.vmem_to_hbm [thread:$0]  %s1537, 512, %s4, [#allocation5], 64, 64, 4
    $region49: #{tpu_custom_call.1} parent=1 // pred_fallthru
      _
    // Predicated region
    $region50: #{tpu_custom_call.1} parent=1 // pred_check
      _
    $region51: #{tpu_custom_call.1} parent=1 // pred_check_branch
      %1544 = sbr.rel (0) target = $region53
    $region52: #{tpu_custom_call.1} parent=1 // pred_region
      %1545 = dma.done [#allocation5], 512
    $region53: #{tpu_custom_call.1} parent=1 // pred_fallthru
      _
    %1546 = vsyncpa [#allocation4], 1
    %1547 = vsyncpa [#allocation7], 1
    %1548 = vsyncpa [#allocation10], 1
    %1549 = vsyncpa [#allocation5], 1

</llo_original>
